<compile_context>
chip_gen: v5e
topology: v5e:2x2
jax: 0.10.0
libtpu: 0.0.40
codegen_flags: <defaults>
</compile_context>

<pallas_src>
import jax
import jax.numpy as jnp
from jax.experimental import pallas as pl
from jax.experimental.pallas import tpu as pltpu


NEG_SLOPE = 0.01  # nn.LeakyReLU default


def _binary_input_kernel(disc_ref, cont_ref, prev_ref,
                         w1d_ref, w1c_ref, w1p_ref, b1_ref,
                         w2_ref, b2_ref, o_ref):
    # Blocks (per grid step): disc (G, c_disc, HW) bf16, cont (G, c_cont, HW)
    # bf16, prev (G, c_prev, HW) f32.  Weight slabs are transposed (K x C)
    # bf16, biases (K, 1) f32 — all VMEM-resident (constant index_maps).
    G = disc_ref.shape[0]
    for g in range(G):                                    # static unroll over G
        x_d = disc_ref[g]                                  # (c_disc, HW) bf16, 0/1 exact
        x_c = cont_ref[g]                                  # (c_cont, HW) bf16
        sp = jax.nn.sigmoid(prev_ref[g]).astype(jnp.bfloat16)  # (c_prev, HW)

        # 1x1 conv #1: channel concat == sum of partial matmuls (all bf16 MXU,
        # f32 accumulation).  The prev block is a tiny K=3 padded matmul.
        h = (jnp.dot(w1d_ref[...], x_d, preferred_element_type=jnp.float32)
             + jnp.dot(w1c_ref[...], x_c, preferred_element_type=jnp.float32)
             + jnp.dot(w1p_ref[...], sp, preferred_element_type=jnp.float32)
             + b1_ref[...])                                # (hidden, HW) f32
        h = jnp.where(h > 0, h, NEG_SLOPE * h)             # LeakyReLU

        # 1x1 conv #2 (bf16 MXU as well).
        y = jnp.dot(w2_ref[...], h.astype(jnp.bfloat16),
                    preferred_element_type=jnp.float32) + b2_ref[...]
        y = jnp.where(y > 0, y, NEG_SLOPE * y)             # LeakyReLU

        o_ref[g] = y.astype(o_ref.dtype)


def binary_input_layer_pallas(discrete, continuous, prev_prediction,
                              w1, b1, w2, b2, *, images_per_step=4):
    """
    discrete:        [B, 1, P, num_classes, H, W]  (0/1 one-/multi-hot)
    continuous:      [B, 1, P, 74, H, W]
    prev_prediction: anything that views to [B*P, 3, H, W]
    w1: [num_classes + 74 + 3, hidden], b1: [hidden]
    w2: [hidden, out_dim],              b2: [out_dim]
    returns: [B*P, out_dim, H, W]   (NCHW f32, matching the PyTorch module)
    """
    B, _, P, c_disc, H, W = discrete.shape
    c_cont = continuous.shape[3]
    n = B * P
    hw = H * W

    # Pure reshapes (views) + dtype casts — no transposes, no concat.
    disc_flat = discrete.reshape(n, c_disc, hw).astype(jnp.bfloat16)   # 0/1 exact
    cont_flat = continuous.reshape(n, c_cont, hw).astype(jnp.bfloat16)
    prev_flat = prev_prediction.reshape(n, -1, hw).astype(jnp.float32)
    c_prev = prev_flat.shape[1]

    hidden = w1.shape[1]
    out_dim = w2.shape[1]

    # Images per grid step: largest divisor of n not exceeding the request,
    # so no remainder handling is needed.  (For v7x keep n//G >= 2 so both
    # TensorCores receive grid shards.)
    G = 1
    for g in range(max(1, min(images_per_step, n)), 0, -1):
        if n % g == 0:
            G = g
            break

    # Transposed bf16 weight slabs matching (K x C) @ (C x HW); split along C
    # in the channel-concat order [disc, cont, prev].  Biases stay f32 (added
    # to the f32 accumulator).
    w1d_t = jnp.transpose(w1[:c_disc, :]).astype(jnp.bfloat16)               # (hidden, c_disc)
    w1c_t = jnp.transpose(w1[c_disc:c_disc + c_cont, :]).astype(jnp.bfloat16)  # (hidden, c_cont)
    w1p_t = jnp.transpose(w1[c_disc + c_cont:, :]).astype(jnp.bfloat16)        # (hidden, c_prev)
    w2_t = jnp.transpose(w2).astype(jnp.bfloat16)                            # (out_dim, hidden)
    b1_2d = b1.reshape(hidden, 1).astype(jnp.float32)
    b2_2d = b2.reshape(out_dim, 1).astype(jnp.float32)

    # Advisory cost hint for XLA's scheduler around the custom call.
    flops = 2 * n * hw * ((c_disc + c_cont + c_prev) * hidden + hidden * out_dim)
    bytes_accessed = (disc_flat.size * 2
                      + cont_flat.size * 2
                      + prev_flat.size * 4
                      + n * out_dim * hw * 4
                      + (w1.size + w2.size) * 2
                      + (b1.size + b2.size) * 4)
    cost = pl.CostEstimate(flops=flops,
                           transcendentals=n * c_prev * hw,
                           bytes_accessed=bytes_accessed)

    out_rows = pl.pallas_call(
        _binary_input_kernel,
        out_shape=jax.ShapeDtypeStruct((n, out_dim, hw), jnp.float32),
        grid_spec=pltpu.PrefetchScalarGridSpec(
            num_scalar_prefetch=0,
            grid=(n // G,),
            in_specs=[
                # Activation blocks: G images of (C, HW) per step.
                pl.BlockSpec((G, c_disc, hw), lambda i: (i, 0, 0)),
                pl.BlockSpec((G, c_cont, hw), lambda i: (i, 0, 0)),
                pl.BlockSpec((G, c_prev, hw), lambda i: (i, 0, 0)),
                # Weights / biases: constant index_map -> VMEM-resident.
                pl.BlockSpec((hidden, c_disc), lambda i: (0, 0)),
                pl.BlockSpec((hidden, c_cont), lambda i: (0, 0)),
                pl.BlockSpec((hidden, c_prev), lambda i: (0, 0)),
                pl.BlockSpec((hidden, 1), lambda i: (0, 0)),
                pl.BlockSpec((out_dim, hidden), lambda i: (0, 0)),
                pl.BlockSpec((out_dim, 1), lambda i: (0, 0)),
            ],
            out_specs=pl.BlockSpec((G, out_dim, hw), lambda i: (i, 0, 0)),
        ),
        compiler_params=pltpu.CompilerParams(
            dimension_semantics=("parallel",)),
        cost_estimate=cost,
    )(disc_flat, cont_flat, prev_flat, w1d_t, w1c_t, w1p_t, b1_2d, w2_t, b2_2d)

    # (n, out_dim, HW) -> NCHW is a pure view.
    return out_rows.reshape(n, out_dim, H, W)


def binary_input_layer_ref(discrete, continuous, prev_prediction, w1, b1, w2, b2):
    """Pure-f32 JAX reference mirroring the PyTorch forward."""
    B, _, P, c_disc, H, W = discrete.shape
    n = B * P
    disc_flat = discrete.reshape(n, -1, H, W)
    cont_flat = continuous.reshape(n, -1, H, W)
    prev_flat = jax.nn.sigmoid(prev_prediction.reshape(n, -1, H, W))
    x = jnp.concatenate([disc_flat, cont_flat, prev_flat], axis=1)   # NCHW
    hp = jax.lax.Precision.HIGHEST
    h = jnp.einsum('nchw,ck->nkhw', x, w1, precision=hp) + b1[None, :, None, None]
    h = jnp.where(h > 0, h, NEG_SLOPE * h)
    y = jnp.einsum('nchw,ck->nkhw', h, w2, precision=hp) + b2[None, :, None, None]
    y = jnp.where(y > 0, y, NEG_SLOPE * y)
    return y


def _bf16_round(x):
    return x.astype(jnp.bfloat16).astype(jnp.float32)


def binary_input_layer_matched_ref(discrete, continuous, prev_prediction,
                                   w1, b1, w2, b2):
    """Reference reproducing the kernel's bf16 rounding points exactly
    (bf16 inputs/weights, f32 accumulation) — used for the tight check."""
    B, _, P, c_disc, H, W = discrete.shape
    c_cont = continuous.shape[3]
    n = B * P
    hw = H * W
    disc = _bf16_round(discrete.reshape(n, c_disc, hw))
    cont = _bf16_round(continuous.reshape(n, c_cont, hw))
    prev = prev_prediction.reshape(n, -1, hw).astype(jnp.float32)
    sp = _bf16_round(jax.nn.sigmoid(prev))
    w1d = _bf16_round(jnp.transpose(w1[:c_disc, :]))
    w1c = _bf16_round(jnp.transpose(w1[c_disc:c_disc + c_cont, :]))
    w1p = _bf16_round(jnp.transpose(w1[c_disc + c_cont:, :]))
    w2t = _bf16_round(jnp.transpose(w2))
    h = (jnp.einsum('kc,ncl->nkl', w1d, disc)
         + jnp.einsum('kc,ncl->nkl', w1c, cont)
         + jnp.einsum('kc,ncl->nkl', w1p, sp)
         + b1[None, :, None])
    h = jnp.where(h > 0, h, NEG_SLOPE * h)
    h = _bf16_round(h)
    y = jnp.einsum('kc,ncl->nkl', w2t, h) + b2[None, :, None]
    y = jnp.where(y > 0, y, NEG_SLOPE * y)
    return y.reshape(n, -1, H, W)


if __name__ == "__main__":
    # Small shapes consistent with the module (num_classes shrunk for the test).
    num_classes = 64
    out_dim = 16
    n_cont = 74                  # hardcoded in the module
    hidden = num_classes // 2    # 32
    B, P, H, W = 2, 4, 16, 16
    c_in = num_classes + n_cont + 3

    key = jax.random.PRNGKey(0)
    k_disc, k_cont, k_prev, k_w1, k_b1, k_w2, k_b2 = jax.random.split(key, 7)

    # One-hot discrete features, continuous features, prev-prediction logits.
    disc_idx = jax.random.randint(k_disc, (B, 1, P, H, W), 0, num_classes)
    discrete = jax.nn.one_hot(disc_idx, num_classes, axis=3, dtype=jnp.float32)
    continuous = jax.random.normal(k_cont, (B, 1, P, n_cont, H, W), jnp.float32)
    prev_prediction = jax.random.normal(k_prev, (B, P, 3, H, W), jnp.float32)

    # Synthetic parameters (shapes match the two 1x1 Conv2d layers).
    w1 = 0.05 * jax.random.normal(k_w1, (c_in, hidden), jnp.float32)
    b1 = 0.05 * jax.random.normal(k_b1, (hidden,), jnp.float32)
    w2 = 0.05 * jax.random.normal(k_w2, (hidden, out_dim), jnp.float32)
    b2 = 0.05 * jax.random.normal(k_b2, (out_dim,), jnp.float32)

    out = binary_input_layer_pallas(discrete, continuous, prev_prediction,
                                    w1, b1, w2, b2, images_per_step=4)
    out = jax.block_until_ready(out)
    assert out.shape == (B * P, out_dim, H, W)

    # Tight check against the bf16-matched reference (structural correctness).
    ref_m = binary_input_layer_matched_ref(discrete, continuous, prev_prediction,
                                           w1, b1, w2, b2)
    err_m = float(jnp.max(jnp.abs(out - ref_m)))
    assert jnp.allclose(out, ref_m, atol=1e-3, rtol=1e-3), err_m

    # Loose check against the pure-f32 reference (bf16 rounding only).
    ref_f = binary_input_layer_ref(discrete, continuous, prev_prediction,
                                   w1, b1, w2, b2)
    err_f = float(jnp.max(jnp.abs(out - ref_f)))
    assert jnp.allclose(out, ref_f, atol=2e-2, rtol=2e-2), err_f

    print("KERNEL_OK")
</pallas_src>

<mosaic_0001>
module attributes {stable_mosaic.version = 11 : i64} {
  func.func @_binary_input_kernel(%arg0: i32, %arg1: memref<4x64x256xbf16, #tpu.memory_space<vmem>>, %arg2: memref<4x74x256xbf16, #tpu.memory_space<vmem>>, %arg3: memref<4x3x256xf32, #tpu.memory_space<vmem>>, %arg4: memref<32x64xbf16, #tpu.memory_space<vmem>>, %arg5: memref<32x74xbf16, #tpu.memory_space<vmem>>, %arg6: memref<32x3xbf16, #tpu.memory_space<vmem>>, %arg7: memref<32x1xf32, #tpu.memory_space<vmem>>, %arg8: memref<16x32xbf16, #tpu.memory_space<vmem>>, %arg9: memref<16x1xf32, #tpu.memory_space<vmem>>, %arg10: memref<4x16x256xf32, #tpu.memory_space<vmem>>) attributes {dimension_semantics = [#tpu.dimension_semantics<parallel>], iteration_bounds = array<i64: 2>, scalar_prefetch = 0 : i64, scratch_operands = 0 : i64, tpu.core_type = #tpu.core_type<tc>, window_params = [{transform_indices = @transform_0, window_bounds = array<i64: 4, 64, 256>}, {transform_indices = @transform_1, window_bounds = array<i64: 4, 74, 256>}, {transform_indices = @transform_2, window_bounds = array<i64: 4, 3, 256>}, {pipeline_mode = #tpu.pipeline_mode<synchronous>, transform_indices = @transform_3, window_bounds = array<i64: 32, 64>}, {pipeline_mode = #tpu.pipeline_mode<synchronous>, transform_indices = @transform_4, window_bounds = array<i64: 32, 74>}, {pipeline_mode = #tpu.pipeline_mode<synchronous>, transform_indices = @transform_5, window_bounds = array<i64: 32, 3>}, {pipeline_mode = #tpu.pipeline_mode<synchronous>, transform_indices = @transform_6, window_bounds = array<i64: 32, 1>}, {pipeline_mode = #tpu.pipeline_mode<synchronous>, transform_indices = @transform_7, window_bounds = array<i64: 16, 32>}, {pipeline_mode = #tpu.pipeline_mode<synchronous>, transform_indices = @transform_8, window_bounds = array<i64: 16, 1>}, {transform_indices = @transform_9, window_bounds = array<i64: 4, 16, 256>}]} {
    %c0 = arith.constant 0 : index
    %c0_0 = arith.constant 0 : index
    %c0_1 = arith.constant 0 : index
    %0 = vector.load %arg1[%c0, %c0_0, %c0_1] : memref<4x64x256xbf16, #tpu.memory_space<vmem>>, vector<1x64x256xbf16>
    %1 = vector.shape_cast %0 : vector<1x64x256xbf16> to vector<64x256xbf16>
    %c0_2 = arith.constant 0 : index
    %c0_3 = arith.constant 0 : index
    %c0_4 = arith.constant 0 : index
    %2 = vector.load %arg2[%c0_2, %c0_3, %c0_4] : memref<4x74x256xbf16, #tpu.memory_space<vmem>>, vector<1x74x256xbf16>
    %3 = vector.shape_cast %2 : vector<1x74x256xbf16> to vector<74x256xbf16>
    %c0_5 = arith.constant 0 : index
    %c0_6 = arith.constant 0 : index
    %c0_7 = arith.constant 0 : index
    %4 = vector.load %arg3[%c0_5, %c0_6, %c0_7] : memref<4x3x256xf32, #tpu.memory_space<vmem>>, vector<1x3x256xf32>
    %5 = vector.shape_cast %4 : vector<1x3x256xf32> to vector<3x256xf32>
    %6 = arith.negf %5 : vector<3x256xf32>
    %7 = math.exp %6 : vector<3x256xf32>
    %cst = arith.constant 1.000000e+00 : f32
    %8 = vector.broadcast %cst : f32 to vector<3x256xf32>
    %9 = arith.addf %8, %7 : vector<3x256xf32>
    %10 = arith.divf %8, %9 : vector<3x256xf32>
    %11 = arith.truncf %10 : vector<3x256xf32> to vector<3x256xbf16>
    %c0_8 = arith.constant 0 : index
    %c0_9 = arith.constant 0 : index
    %12 = vector.load %arg4[%c0_8, %c0_9] : memref<32x64xbf16, #tpu.memory_space<vmem>>, vector<32x64xbf16>
    %cst_10 = arith.constant dense<0.000000e+00> : vector<32x256xf32>
    %13 = tpu.matmul %12, %1, %cst_10 {dimension_numbers = #tpu.dot_dimension_numbers<[1], [0], [0], [1], [0, 0, 1, 1], [], []>} : vector<32x64xbf16>, vector<64x256xbf16>, vector<32x256xf32> -> vector<32x256xf32>
    %c0_11 = arith.constant 0 : index
    %c0_12 = arith.constant 0 : index
    %14 = vector.load %arg5[%c0_11, %c0_12] : memref<32x74xbf16, #tpu.memory_space<vmem>>, vector<32x74xbf16>
    %cst_13 = arith.constant dense<0.000000e+00> : vector<32x256xf32>
    %15 = tpu.matmul %14, %3, %cst_13 {dimension_numbers = #tpu.dot_dimension_numbers<[1], [0], [0], [1], [0, 0, 1, 1], [], []>} : vector<32x74xbf16>, vector<74x256xbf16>, vector<32x256xf32> -> vector<32x256xf32>
    %16 = arith.addf %13, %15 : vector<32x256xf32>
    %c0_14 = arith.constant 0 : index
    %c0_15 = arith.constant 0 : index
    %17 = vector.load %arg6[%c0_14, %c0_15] : memref<32x3xbf16, #tpu.memory_space<vmem>>, vector<32x3xbf16>
    %cst_16 = arith.constant dense<0.000000e+00> : vector<32x256xf32>
    %18 = tpu.matmul %17, %11, %cst_16 {dimension_numbers = #tpu.dot_dimension_numbers<[1], [0], [0], [1], [0, 0, 1, 1], [], []>} : vector<32x3xbf16>, vector<3x256xbf16>, vector<32x256xf32> -> vector<32x256xf32>
    %19 = arith.addf %16, %18 : vector<32x256xf32>
    %c0_17 = arith.constant 0 : index
    %c0_18 = arith.constant 0 : index
    %20 = vector.load %arg7[%c0_17, %c0_18] : memref<32x1xf32, #tpu.memory_space<vmem>>, vector<32x1xf32>
    %21 = vector.broadcast %20 : vector<32x1xf32> to vector<32x256xf32>
    %22 = arith.addf %19, %21 : vector<32x256xf32>
    %cst_19 = arith.constant 0.000000e+00 : f32
    %23 = vector.broadcast %cst_19 : f32 to vector<32x256xf32>
    %24 = arith.cmpf ogt, %22, %23 : vector<32x256xf32>
    %cst_20 = arith.constant 0.00999999977 : f32
    %25 = vector.broadcast %cst_20 : f32 to vector<32x256xf32>
    %26 = arith.mulf %25, %22 : vector<32x256xf32>
    %27 = arith.select %24, %22, %26 : vector<32x256xi1>, vector<32x256xf32>
    %c0_21 = arith.constant 0 : index
    %c0_22 = arith.constant 0 : index
    %28 = vector.load %arg8[%c0_21, %c0_22] : memref<16x32xbf16, #tpu.memory_space<vmem>>, vector<16x32xbf16>
    %29 = arith.truncf %27 : vector<32x256xf32> to vector<32x256xbf16>
    %cst_23 = arith.constant dense<0.000000e+00> : vector<16x256xf32>
    %30 = tpu.matmul %28, %29, %cst_23 {dimension_numbers = #tpu.dot_dimension_numbers<[1], [0], [0], [1], [0, 0, 1, 1], [], []>} : vector<16x32xbf16>, vector<32x256xbf16>, vector<16x256xf32> -> vector<16x256xf32>
    %c0_24 = arith.constant 0 : index
    %c0_25 = arith.constant 0 : index
    %31 = vector.load %arg9[%c0_24, %c0_25] : memref<16x1xf32, #tpu.memory_space<vmem>>, vector<16x1xf32>
    %32 = vector.broadcast %31 : vector<16x1xf32> to vector<16x256xf32>
    %33 = arith.addf %30, %32 : vector<16x256xf32>
    %cst_26 = arith.constant 0.000000e+00 : f32
    %34 = vector.broadcast %cst_26 : f32 to vector<16x256xf32>
    %35 = arith.cmpf ogt, %33, %34 : vector<16x256xf32>
    %cst_27 = arith.constant 0.00999999977 : f32
    %36 = vector.broadcast %cst_27 : f32 to vector<16x256xf32>
    %37 = arith.mulf %36, %33 : vector<16x256xf32>
    %38 = arith.select %35, %33, %37 : vector<16x256xi1>, vector<16x256xf32>
    %c0_28 = arith.constant 0 : index
    %c0_29 = arith.constant 0 : index
    %c0_30 = arith.constant 0 : index
    %39 = vector.load %arg10[%c0_28, %c0_29, %c0_30] : memref<4x16x256xf32, #tpu.memory_space<vmem>>, vector<1x16x256xf32>
    %40 = vector.shape_cast %39 : vector<1x16x256xf32> to vector<16x256xf32>
    %41 = vector.shape_cast %38 : vector<16x256xf32> to vector<1x16x256xf32>
    tpu.vector_store %arg10[%c0_28, %c0_29, %c0_30], %41 {strides = array<i32>} : memref<4x16x256xf32, #tpu.memory_space<vmem>>, vector<1x16x256xf32>,
    %c1 = arith.constant 1 : index
    %c0_31 = arith.constant 0 : index
    %c0_32 = arith.constant 0 : index
    %42 = vector.load %arg1[%c1, %c0_31, %c0_32] : memref<4x64x256xbf16, #tpu.memory_space<vmem>>, vector<1x64x256xbf16>
    %43 = vector.shape_cast %42 : vector<1x64x256xbf16> to vector<64x256xbf16>
    %c1_33 = arith.constant 1 : index
    %c0_34 = arith.constant 0 : index
    %c0_35 = arith.constant 0 : index
    %44 = vector.load %arg2[%c1_33, %c0_34, %c0_35] : memref<4x74x256xbf16, #tpu.memory_space<vmem>>, vector<1x74x256xbf16>
    %45 = vector.shape_cast %44 : vector<1x74x256xbf16> to vector<74x256xbf16>
    %c1_36 = arith.constant 1 : index
    %c0_37 = arith.constant 0 : index
    %c0_38 = arith.constant 0 : index
    %46 = vector.load %arg3[%c1_36, %c0_37, %c0_38] : memref<4x3x256xf32, #tpu.memory_space<vmem>>, vector<1x3x256xf32>
    %47 = vector.shape_cast %46 : vector<1x3x256xf32> to vector<3x256xf32>
    %48 = arith.negf %47 : vector<3x256xf32>
    %49 = math.exp %48 : vector<3x256xf32>
    %cst_39 = arith.constant 1.000000e+00 : f32
    %50 = vector.broadcast %cst_39 : f32 to vector<3x256xf32>
    %51 = arith.addf %50, %49 : vector<3x256xf32>
    %52 = arith.divf %50, %51 : vector<3x256xf32>
    %53 = arith.truncf %52 : vector<3x256xf32> to vector<3x256xbf16>
    %c0_40 = arith.constant 0 : index
    %c0_41 = arith.constant 0 : index
    %54 = vector.load %arg4[%c0_40, %c0_41] : memref<32x64xbf16, #tpu.memory_space<vmem>>, vector<32x64xbf16>
    %cst_42 = arith.constant dense<0.000000e+00> : vector<32x256xf32>
    %55 = tpu.matmul %54, %43, %cst_42 {dimension_numbers = #tpu.dot_dimension_numbers<[1], [0], [0], [1], [0, 0, 1, 1], [], []>} : vector<32x64xbf16>, vector<64x256xbf16>, vector<32x256xf32> -> vector<32x256xf32>
    %c0_43 = arith.constant 0 : index
    %c0_44 = arith.constant 0 : index
    %56 = vector.load %arg5[%c0_43, %c0_44] : memref<32x74xbf16, #tpu.memory_space<vmem>>, vector<32x74xbf16>
    %cst_45 = arith.constant dense<0.000000e+00> : vector<32x256xf32>
    %57 = tpu.matmul %56, %45, %cst_45 {dimension_numbers = #tpu.dot_dimension_numbers<[1], [0], [0], [1], [0, 0, 1, 1], [], []>} : vector<32x74xbf16>, vector<74x256xbf16>, vector<32x256xf32> -> vector<32x256xf32>
    %58 = arith.addf %55, %57 : vector<32x256xf32>
    %c0_46 = arith.constant 0 : index
    %c0_47 = arith.constant 0 : index
    %59 = vector.load %arg6[%c0_46, %c0_47] : memref<32x3xbf16, #tpu.memory_space<vmem>>, vector<32x3xbf16>
    %cst_48 = arith.constant dense<0.000000e+00> : vector<32x256xf32>
    %60 = tpu.matmul %59, %53, %cst_48 {dimension_numbers = #tpu.dot_dimension_numbers<[1], [0], [0], [1], [0, 0, 1, 1], [], []>} : vector<32x3xbf16>, vector<3x256xbf16>, vector<32x256xf32> -> vector<32x256xf32>
    %61 = arith.addf %58, %60 : vector<32x256xf32>
    %c0_49 = arith.constant 0 : index
    %c0_50 = arith.constant 0 : index
    %62 = vector.load %arg7[%c0_49, %c0_50] : memref<32x1xf32, #tpu.memory_space<vmem>>, vector<32x1xf32>
    %63 = vector.broadcast %62 : vector<32x1xf32> to vector<32x256xf32>
    %64 = arith.addf %61, %63 : vector<32x256xf32>
    %cst_51 = arith.constant 0.000000e+00 : f32
    %65 = vector.broadcast %cst_51 : f32 to vector<32x256xf32>
    %66 = arith.cmpf ogt, %64, %65 : vector<32x256xf32>
    %cst_52 = arith.constant 0.00999999977 : f32
    %67 = vector.broadcast %cst_52 : f32 to vector<32x256xf32>
    %68 = arith.mulf %67, %64 : vector<32x256xf32>
    %69 = arith.select %66, %64, %68 : vector<32x256xi1>, vector<32x256xf32>
    %c0_53 = arith.constant 0 : index
    %c0_54 = arith.constant 0 : index
    %70 = vector.load %arg8[%c0_53, %c0_54] : memref<16x32xbf16, #tpu.memory_space<vmem>>, vector<16x32xbf16>
    %71 = arith.truncf %69 : vector<32x256xf32> to vector<32x256xbf16>
    %cst_55 = arith.constant dense<0.000000e+00> : vector<16x256xf32>
    %72 = tpu.matmul %70, %71, %cst_55 {dimension_numbers = #tpu.dot_dimension_numbers<[1], [0], [0], [1], [0, 0, 1, 1], [], []>} : vector<16x32xbf16>, vector<32x256xbf16>, vector<16x256xf32> -> vector<16x256xf32>
    %c0_56 = arith.constant 0 : index
    %c0_57 = arith.constant 0 : index
    %73 = vector.load %arg9[%c0_56, %c0_57] : memref<16x1xf32, #tpu.memory_space<vmem>>, vector<16x1xf32>
    %74 = vector.broadcast %73 : vector<16x1xf32> to vector<16x256xf32>
    %75 = arith.addf %72, %74 : vector<16x256xf32>
    %cst_58 = arith.constant 0.000000e+00 : f32
    %76 = vector.broadcast %cst_58 : f32 to vector<16x256xf32>
    %77 = arith.cmpf ogt, %75, %76 : vector<16x256xf32>
    %cst_59 = arith.constant 0.00999999977 : f32
    %78 = vector.broadcast %cst_59 : f32 to vector<16x256xf32>
    %79 = arith.mulf %78, %75 : vector<16x256xf32>
    %80 = arith.select %77, %75, %79 : vector<16x256xi1>, vector<16x256xf32>
    %c1_60 = arith.constant 1 : index
    %c0_61 = arith.constant 0 : index
    %c0_62 = arith.constant 0 : index
    %81 = vector.load %arg10[%c1_60, %c0_61, %c0_62] : memref<4x16x256xf32, #tpu.memory_space<vmem>>, vector<1x16x256xf32>
    %82 = vector.shape_cast %81 : vector<1x16x256xf32> to vector<16x256xf32>
    %83 = vector.shape_cast %80 : vector<16x256xf32> to vector<1x16x256xf32>
    tpu.vector_store %arg10[%c1_60, %c0_61, %c0_62], %83 {strides = array<i32>} : memref<4x16x256xf32, #tpu.memory_space<vmem>>, vector<1x16x256xf32>,
    %c2 = arith.constant 2 : index
    %c0_63 = arith.constant 0 : index
    %c0_64 = arith.constant 0 : index
    %84 = vector.load %arg1[%c2, %c0_63, %c0_64] : memref<4x64x256xbf16, #tpu.memory_space<vmem>>, vector<1x64x256xbf16>
    %85 = vector.shape_cast %84 : vector<1x64x256xbf16> to vector<64x256xbf16>
    %c2_65 = arith.constant 2 : index
    %c0_66 = arith.constant 0 : index
    %c0_67 = arith.constant 0 : index
    %86 = vector.load %arg2[%c2_65, %c0_66, %c0_67] : memref<4x74x256xbf16, #tpu.memory_space<vmem>>, vector<1x74x256xbf16>
    %87 = vector.shape_cast %86 : vector<1x74x256xbf16> to vector<74x256xbf16>
    %c2_68 = arith.constant 2 : index
    %c0_69 = arith.constant 0 : index
    %c0_70 = arith.constant 0 : index
    %88 = vector.load %arg3[%c2_68, %c0_69, %c0_70] : memref<4x3x256xf32, #tpu.memory_space<vmem>>, vector<1x3x256xf32>
    %89 = vector.shape_cast %88 : vector<1x3x256xf32> to vector<3x256xf32>
    %90 = arith.negf %89 : vector<3x256xf32>
    %91 = math.exp %90 : vector<3x256xf32>
    %cst_71 = arith.constant 1.000000e+00 : f32
    %92 = vector.broadcast %cst_71 : f32 to vector<3x256xf32>
    %93 = arith.addf %92, %91 : vector<3x256xf32>
    %94 = arith.divf %92, %93 : vector<3x256xf32>
    %95 = arith.truncf %94 : vector<3x256xf32> to vector<3x256xbf16>
    %c0_72 = arith.constant 0 : index
    %c0_73 = arith.constant 0 : index
    %96 = vector.load %arg4[%c0_72, %c0_73] : memref<32x64xbf16, #tpu.memory_space<vmem>>, vector<32x64xbf16>
    %cst_74 = arith.constant dense<0.000000e+00> : vector<32x256xf32>
    %97 = tpu.matmul %96, %85, %cst_74 {dimension_numbers = #tpu.dot_dimension_numbers<[1], [0], [0], [1], [0, 0, 1, 1], [], []>} : vector<32x64xbf16>, vector<64x256xbf16>, vector<32x256xf32> -> vector<32x256xf32>
    %c0_75 = arith.constant 0 : index
    %c0_76 = arith.constant 0 : index
    %98 = vector.load %arg5[%c0_75, %c0_76] : memref<32x74xbf16, #tpu.memory_space<vmem>>, vector<32x74xbf16>
    %cst_77 = arith.constant dense<0.000000e+00> : vector<32x256xf32>
    %99 = tpu.matmul %98, %87, %cst_77 {dimension_numbers = #tpu.dot_dimension_numbers<[1], [0], [0], [1], [0, 0, 1, 1], [], []>} : vector<32x74xbf16>, vector<74x256xbf16>, vector<32x256xf32> -> vector<32x256xf32>
    %100 = arith.addf %97, %99 : vector<32x256xf32>
    %c0_78 = arith.constant 0 : index
    %c0_79 = arith.constant 0 : index
    %101 = vector.load %arg6[%c0_78, %c0_79] : memref<32x3xbf16, #tpu.memory_space<vmem>>, vector<32x3xbf16>
    %cst_80 = arith.constant dense<0.000000e+00> : vector<32x256xf32>
    %102 = tpu.matmul %101, %95, %cst_80 {dimension_numbers = #tpu.dot_dimension_numbers<[1], [0], [0], [1], [0, 0, 1, 1], [], []>} : vector<32x3xbf16>, vector<3x256xbf16>, vector<32x256xf32> -> vector<32x256xf32>
    %103 = arith.addf %100, %102 : vector<32x256xf32>
    %c0_81 = arith.constant 0 : index
    %c0_82 = arith.constant 0 : index
    %104 = vector.load %arg7[%c0_81, %c0_82] : memref<32x1xf32, #tpu.memory_space<vmem>>, vector<32x1xf32>
    %105 = vector.broadcast %104 : vector<32x1xf32> to vector<32x256xf32>
    %106 = arith.addf %103, %105 : vector<32x256xf32>
    %cst_83 = arith.constant 0.000000e+00 : f32
    %107 = vector.broadcast %cst_83 : f32 to vector<32x256xf32>
    %108 = arith.cmpf ogt, %106, %107 : vector<32x256xf32>
    %cst_84 = arith.constant 0.00999999977 : f32
    %109 = vector.broadcast %cst_84 : f32 to vector<32x256xf32>
    %110 = arith.mulf %109, %106 : vector<32x256xf32>
    %111 = arith.select %108, %106, %110 : vector<32x256xi1>, vector<32x256xf32>
    %c0_85 = arith.constant 0 : index
    %c0_86 = arith.constant 0 : index
    %112 = vector.load %arg8[%c0_85, %c0_86] : memref<16x32xbf16, #tpu.memory_space<vmem>>, vector<16x32xbf16>
    %113 = arith.truncf %111 : vector<32x256xf32> to vector<32x256xbf16>
    %cst_87 = arith.constant dense<0.000000e+00> : vector<16x256xf32>
    %114 = tpu.matmul %112, %113, %cst_87 {dimension_numbers = #tpu.dot_dimension_numbers<[1], [0], [0], [1], [0, 0, 1, 1], [], []>} : vector<16x32xbf16>, vector<32x256xbf16>, vector<16x256xf32> -> vector<16x256xf32>
    %c0_88 = arith.constant 0 : index
    %c0_89 = arith.constant 0 : index
    %115 = vector.load %arg9[%c0_88, %c0_89] : memref<16x1xf32, #tpu.memory_space<vmem>>, vector<16x1xf32>
    %116 = vector.broadcast %115 : vector<16x1xf32> to vector<16x256xf32>
    %117 = arith.addf %114, %116 : vector<16x256xf32>
    %cst_90 = arith.constant 0.000000e+00 : f32
    %118 = vector.broadcast %cst_90 : f32 to vector<16x256xf32>
    %119 = arith.cmpf ogt, %117, %118 : vector<16x256xf32>
    %cst_91 = arith.constant 0.00999999977 : f32
    %120 = vector.broadcast %cst_91 : f32 to vector<16x256xf32>
    %121 = arith.mulf %120, %117 : vector<16x256xf32>
    %122 = arith.select %119, %117, %121 : vector<16x256xi1>, vector<16x256xf32>
    %c2_92 = arith.constant 2 : index
    %c0_93 = arith.constant 0 : index
    %c0_94 = arith.constant 0 : index
    %123 = vector.load %arg10[%c2_92, %c0_93, %c0_94] : memref<4x16x256xf32, #tpu.memory_space<vmem>>, vector<1x16x256xf32>
    %124 = vector.shape_cast %123 : vector<1x16x256xf32> to vector<16x256xf32>
    %125 = vector.shape_cast %122 : vector<16x256xf32> to vector<1x16x256xf32>
    tpu.vector_store %arg10[%c2_92, %c0_93, %c0_94], %125 {strides = array<i32>} : memref<4x16x256xf32, #tpu.memory_space<vmem>>, vector<1x16x256xf32>,
    %c3 = arith.constant 3 : index
    %c0_95 = arith.constant 0 : index
    %c0_96 = arith.constant 0 : index
    %126 = vector.load %arg1[%c3, %c0_95, %c0_96] : memref<4x64x256xbf16, #tpu.memory_space<vmem>>, vector<1x64x256xbf16>
    %127 = vector.shape_cast %126 : vector<1x64x256xbf16> to vector<64x256xbf16>
    %c3_97 = arith.constant 3 : index
    %c0_98 = arith.constant 0 : index
    %c0_99 = arith.constant 0 : index
    %128 = vector.load %arg2[%c3_97, %c0_98, %c0_99] : memref<4x74x256xbf16, #tpu.memory_space<vmem>>, vector<1x74x256xbf16>
    %129 = vector.shape_cast %128 : vector<1x74x256xbf16> to vector<74x256xbf16>
    %c3_100 = arith.constant 3 : index
    %c0_101 = arith.constant 0 : index
    %c0_102 = arith.constant 0 : index
    %130 = vector.load %arg3[%c3_100, %c0_101, %c0_102] : memref<4x3x256xf32, #tpu.memory_space<vmem>>, vector<1x3x256xf32>
    %131 = vector.shape_cast %130 : vector<1x3x256xf32> to vector<3x256xf32>
    %132 = arith.negf %131 : vector<3x256xf32>
    %133 = math.exp %132 : vector<3x256xf32>
    %cst_103 = arith.constant 1.000000e+00 : f32
    %134 = vector.broadcast %cst_103 : f32 to vector<3x256xf32>
    %135 = arith.addf %134, %133 : vector<3x256xf32>
    %136 = arith.divf %134, %135 : vector<3x256xf32>
    %137 = arith.truncf %136 : vector<3x256xf32> to vector<3x256xbf16>
    %c0_104 = arith.constant 0 : index
    %c0_105 = arith.constant 0 : index
    %138 = vector.load %arg4[%c0_104, %c0_105] : memref<32x64xbf16, #tpu.memory_space<vmem>>, vector<32x64xbf16>
    %cst_106 = arith.constant dense<0.000000e+00> : vector<32x256xf32>
    %139 = tpu.matmul %138, %127, %cst_106 {dimension_numbers = #tpu.dot_dimension_numbers<[1], [0], [0], [1], [0, 0, 1, 1], [], []>} : vector<32x64xbf16>, vector<64x256xbf16>, vector<32x256xf32> -> vector<32x256xf32>
    %c0_107 = arith.constant 0 : index
    %c0_108 = arith.constant 0 : index
    %140 = vector.load %arg5[%c0_107, %c0_108] : memref<32x74xbf16, #tpu.memory_space<vmem>>, vector<32x74xbf16>
    %cst_109 = arith.constant dense<0.000000e+00> : vector<32x256xf32>
    %141 = tpu.matmul %140, %129, %cst_109 {dimension_numbers = #tpu.dot_dimension_numbers<[1], [0], [0], [1], [0, 0, 1, 1], [], []>} : vector<32x74xbf16>, vector<74x256xbf16>, vector<32x256xf32> -> vector<32x256xf32>
    %142 = arith.addf %139, %141 : vector<32x256xf32>
    %c0_110 = arith.constant 0 : index
    %c0_111 = arith.constant 0 : index
    %143 = vector.load %arg6[%c0_110, %c0_111] : memref<32x3xbf16, #tpu.memory_space<vmem>>, vector<32x3xbf16>
    %cst_112 = arith.constant dense<0.000000e+00> : vector<32x256xf32>
    %144 = tpu.matmul %143, %137, %cst_112 {dimension_numbers = #tpu.dot_dimension_numbers<[1], [0], [0], [1], [0, 0, 1, 1], [], []>} : vector<32x3xbf16>, vector<3x256xbf16>, vector<32x256xf32> -> vector<32x256xf32>
    %145 = arith.addf %142, %144 : vector<32x256xf32>
    %c0_113 = arith.constant 0 : index
    %c0_114 = arith.constant 0 : index
    %146 = vector.load %arg7[%c0_113, %c0_114] : memref<32x1xf32, #tpu.memory_space<vmem>>, vector<32x1xf32>
    %147 = vector.broadcast %146 : vector<32x1xf32> to vector<32x256xf32>
    %148 = arith.addf %145, %147 : vector<32x256xf32>
    %cst_115 = arith.constant 0.000000e+00 : f32
    %149 = vector.broadcast %cst_115 : f32 to vector<32x256xf32>
    %150 = arith.cmpf ogt, %148, %149 : vector<32x256xf32>
    %cst_116 = arith.constant 0.00999999977 : f32
    %151 = vector.broadcast %cst_116 : f32 to vector<32x256xf32>
    %152 = arith.mulf %151, %148 : vector<32x256xf32>
    %153 = arith.select %150, %148, %152 : vector<32x256xi1>, vector<32x256xf32>
    %c0_117 = arith.constant 0 : index
    %c0_118 = arith.constant 0 : index
    %154 = vector.load %arg8[%c0_117, %c0_118] : memref<16x32xbf16, #tpu.memory_space<vmem>>, vector<16x32xbf16>
    %155 = arith.truncf %153 : vector<32x256xf32> to vector<32x256xbf16>
    %cst_119 = arith.constant dense<0.000000e+00> : vector<16x256xf32>
    %156 = tpu.matmul %154, %155, %cst_119 {dimension_numbers = #tpu.dot_dimension_numbers<[1], [0], [0], [1], [0, 0, 1, 1], [], []>} : vector<16x32xbf16>, vector<32x256xbf16>, vector<16x256xf32> -> vector<16x256xf32>
    %c0_120 = arith.constant 0 : index
    %c0_121 = arith.constant 0 : index
    %157 = vector.load %arg9[%c0_120, %c0_121] : memref<16x1xf32, #tpu.memory_space<vmem>>, vector<16x1xf32>
    %158 = vector.broadcast %157 : vector<16x1xf32> to vector<16x256xf32>
    %159 = arith.addf %156, %158 : vector<16x256xf32>
    %cst_122 = arith.constant 0.000000e+00 : f32
    %160 = vector.broadcast %cst_122 : f32 to vector<16x256xf32>
    %161 = arith.cmpf ogt, %159, %160 : vector<16x256xf32>
    %cst_123 = arith.constant 0.00999999977 : f32
    %162 = vector.broadcast %cst_123 : f32 to vector<16x256xf32>
    %163 = arith.mulf %162, %159 : vector<16x256xf32>
    %164 = arith.select %161, %159, %163 : vector<16x256xi1>, vector<16x256xf32>
    %c3_124 = arith.constant 3 : index
    %c0_125 = arith.constant 0 : index
    %c0_126 = arith.constant 0 : index
    %165 = vector.load %arg10[%c3_124, %c0_125, %c0_126] : memref<4x16x256xf32, #tpu.memory_space<vmem>>, vector<1x16x256xf32>
    %166 = vector.shape_cast %165 : vector<1x16x256xf32> to vector<16x256xf32>
    %167 = vector.shape_cast %164 : vector<16x256xf32> to vector<1x16x256xf32>
    tpu.vector_store %arg10[%c3_124, %c0_125, %c0_126], %167 {strides = array<i32>} : memref<4x16x256xf32, #tpu.memory_space<vmem>>, vector<1x16x256xf32>,
    return
  }
  func.func @transform_0(%arg0: i32) -> (i32, i32, i32) {
    %c0_i32 = arith.constant 0 : i32
    %c0_i32_0 = arith.constant 0 : i32
    %c0_i32_1 = arith.constant 0 : i32
    return %arg0, %c0_i32, %c0_i32_0 : i32, i32, i32
  }
  func.func @transform_1(%arg0: i32) -> (i32, i32, i32) {
    %c0_i32 = arith.constant 0 : i32
    %c0_i32_0 = arith.constant 0 : i32
    %c0_i32_1 = arith.constant 0 : i32
    return %arg0, %c0_i32, %c0_i32_0 : i32, i32, i32
  }
  func.func @transform_2(%arg0: i32) -> (i32, i32, i32) {
    %c0_i32 = arith.constant 0 : i32
    %c0_i32_0 = arith.constant 0 : i32
    %c0_i32_1 = arith.constant 0 : i32
    return %arg0, %c0_i32, %c0_i32_0 : i32, i32, i32
  }
  func.func @transform_3(%arg0: i32) -> (i32, i32) {
    %c0_i32 = arith.constant 0 : i32
    %c0_i32_0 = arith.constant 0 : i32
    %c0_i32_1 = arith.constant 0 : i32
    return %c0_i32, %c0_i32_0 : i32, i32
  }
  func.func @transform_4(%arg0: i32) -> (i32, i32) {
    %c0_i32 = arith.constant 0 : i32
    %c0_i32_0 = arith.constant 0 : i32
    %c0_i32_1 = arith.constant 0 : i32
    return %c0_i32, %c0_i32_0 : i32, i32
  }
  func.func @transform_5(%arg0: i32) -> (i32, i32) {
    %c0_i32 = arith.constant 0 : i32
    %c0_i32_0 = arith.constant 0 : i32
    %c0_i32_1 = arith.constant 0 : i32
    return %c0_i32, %c0_i32_0 : i32, i32
  }
  func.func @transform_6(%arg0: i32) -> (i32, i32) {
    %c0_i32 = arith.constant 0 : i32
    %c0_i32_0 = arith.constant 0 : i32
    %c0_i32_1 = arith.constant 0 : i32
    return %c0_i32, %c0_i32_0 : i32, i32
  }
  func.func @transform_7(%arg0: i32) -> (i32, i32) {
    %c0_i32 = arith.constant 0 : i32
    %c0_i32_0 = arith.constant 0 : i32
    %c0_i32_1 = arith.constant 0 : i32
    return %c0_i32, %c0_i32_0 : i32, i32
  }
  func.func @transform_8(%arg0: i32) -> (i32, i32) {
    %c0_i32 = arith.constant 0 : i32
    %c0_i32_0 = arith.constant 0 : i32
    %c0_i32_1 = arith.constant 0 : i32
    return %c0_i32, %c0_i32_0 : i32, i32
  }
  func.func @transform_9(%arg0: i32) -> (i32, i32, i32) {
    %c0_i32 = arith.constant 0 : i32
    %c0_i32_0 = arith.constant 0 : i32
    %c0_i32_1 = arith.constant 0 : i32
    return %arg0, %c0_i32, %c0_i32_0 : i32, i32, i32
  }
}

</mosaic_0001>

<llo_original>
// kernel: tpu_custom_call.1
$region0: #{tpu_custom_call.1}
  #allocation0 [shape = 'u32[]', space=smem, size = 0x4, offset = 0x4, fixed_abs, tag = 'smem constant byte address 0x4 - core index']
  #allocation1 [shape = 'u32[72,128]{1,0:T(1,128)}', space=vmem, size = 0x9000, scoped, tag = 'internal scratch']
  %s0 = inlined_call_operand.vmem [shape: bf16[8,64,256], index: 0, kind: input, shape index: {}]
  %s1 = inlined_call_operand.vmem [shape: bf16[8,74,256], index: 1, kind: input, shape index: {}]
  %s2 = inlined_call_operand.vmem [shape: f32[8,3,256], index: 2, kind: input, shape index: {}]
  %s3 = inlined_call_operand.vmem [shape: bf16[32,64], index: 3, kind: input, shape index: {}]
  %s4 = inlined_call_operand.vmem [shape: bf16[32,74], index: 4, kind: input, shape index: {}]
  %s5 = inlined_call_operand.vmem [shape: bf16[32,3], index: 5, kind: input, shape index: {}]
  %s6 = inlined_call_operand.vmem [shape: f32[32,1], index: 6, kind: input, shape index: {}]
  %s7 = inlined_call_operand.vmem [shape: bf16[16,32], index: 7, kind: input, shape index: {}]
  %s8 = inlined_call_operand.vmem [shape: f32[16,1], index: 8, kind: input, shape index: {}]
  %s9 = inlined_call_operand.hbm [shape: f32[8,16,256], index: 9, kind: output, shape index: {}]
  %s10 = sld [smem:[#allocation0]]
  $region69: #{tpu_custom_call.1} parent=0
    _
  %s12 = ssub.s32 1, %s10
  %s13 = scalar_select 0, %s12, %s10
  $region1: #{tpu_custom_call.1} parent=0
    #allocation2 [shape = 'u8[131072]{0}', space=vmem, size = 0x20000, scoped, tag = 'output window, operand 0']
    #allocation3 [shape = 's32[2]{0}', space=sflag, size = 0x8, scoped, tag = 'scoped memory for tpu_custom_call.1']
    %14 = vsyncpa [#allocation3], 0
    %s15 = scalar_lea.sflag [#allocation3], 1
    %16 = vsyncpa %s15, 0
    loop: start=0, step=1, limit=4
    $region2: #{tpu_custom_call.1} parent=1 // loop_pre_header
      _
    $region3: #{tpu_custom_call.1} parent=1 // loop_header
      %s18 = sphi 0, %s22
      %p19 = scmp.ge.s32.totalorder %s18, 4
      %s28 = sphi 0, %s30
      %s31 = sphi 0, %s28
      %s32 = sphi 0, %s31
      %s48 = sphi 0, %s32
      %s54 = sphi 0, %s56
      %s57 = sphi 0, %s54
      %s58 = sphi 0, %s57
      %s74 = sphi 0, %s58
      %s80 = sphi 0, %s82
      %s83 = sphi 0, %s80
      %s84 = sphi 0, %s83
      %s100 = sphi 0, %s84
      %s104 = sphi 0, %s104
      %s106 = sphi 0, %s104
      %s107 = sphi 0, %s106
      %s121 = sphi 0, %s107
      %s125 = sphi 0, %s125
      %s127 = sphi 0, %s125
      %s128 = sphi 0, %s127
      %s142 = sphi 0, %s128
      %s146 = sphi 0, %s146
      %s148 = sphi 0, %s146
      %s149 = sphi 0, %s148
      %s163 = sphi 0, %s149
      %s167 = sphi 0, %s167
      %s169 = sphi 0, %s167
      %s170 = sphi 0, %s169
      %s184 = sphi 0, %s170
      %s188 = sphi 0, %s188
      %s190 = sphi 0, %s188
      %s191 = sphi 0, %s190
      %s205 = sphi 0, %s191
      %s209 = sphi 0, %s209
      %s211 = sphi 0, %s209
      %s212 = sphi 0, %s211
      %s226 = sphi 0, %s212
      %s232 = sphi 0, %s234
      %s235 = sphi 0, %s232
      %s236 = sphi 0, %s235
      %s252 = sphi 0, %s236
    $region4: #{tpu_custom_call.1} parent=1 // loop_header_branch
      %21 = sbr.rel (%p19) target = $region8
    $region5: #{tpu_custom_call.1} parent=1 // loop_body
      %s23 = ssub.s32 %s18, 1
      %s24 = ssub.s32 %s18, 2
      %s25 = sadd.s32 %s18, 1
      %s26 = ssub.s32 %s18, %s25
      %p27 = scmp.eq.s32.totalorder %s26, 0
      %s29 = sadd.s32 %s28, 1
      %s30 = scalar_select %p27, %s28, %s29
      %p33 = pneg %p27
      %p34 = scmp.eq.s32.totalorder %s18, 1
      %p35 = por %p33, %p34
      %p36 = scmp.ne.s32.totalorder %s28, %s31
      %p37 = scmp.eq.s32.totalorder %s18, 0
      %p38 = por %p36, %p37
      %p39 = scmp.ne.s32.totalorder %s28, %s31
      %p40 = scmp.eq.s32.totalorder %s23, 1
      %p41 = por %p39, %p40
      %p42 = scmp.ne.s32.totalorder %s31, %s32
      %p43 = scmp.eq.s32.totalorder %s23, 0
      %p44 = por %p42, %p43
      %p45 = scmp.ne.s32.totalorder %s31, %s32
      %p46 = scmp.eq.s32.totalorder %s24, 1
      %p47 = por %p45, %p46
      %p49 = scmp.ne.s32.totalorder %s32, %s48
      %p50 = scmp.eq.s32.totalorder %s24, 0
      %p51 = por %p49, %p50
      %s52 = ssub.s32 %s18, %s25
      %p53 = scmp.eq.s32.totalorder %s52, 0
      %s55 = sadd.s32 %s54, 1
      %s56 = scalar_select %p53, %s54, %s55
      %p59 = pneg %p53
      %p60 = scmp.eq.s32.totalorder %s18, 1
      %p61 = por %p59, %p60
      %p62 = scmp.ne.s32.totalorder %s54, %s57
      %p63 = scmp.eq.s32.totalorder %s18, 0
      %p64 = por %p62, %p63
      %p65 = scmp.ne.s32.totalorder %s54, %s57
      %p66 = scmp.eq.s32.totalorder %s23, 1
      %p67 = por %p65, %p66
      %p68 = scmp.ne.s32.totalorder %s57, %s58
      %p69 = scmp.eq.s32.totalorder %s23, 0
      %p70 = por %p68, %p69
      %p71 = scmp.ne.s32.totalorder %s57, %s58
      %p72 = scmp.eq.s32.totalorder %s24, 1
      %p73 = por %p71, %p72
      %p75 = scmp.ne.s32.totalorder %s58, %s74
      %p76 = scmp.eq.s32.totalorder %s24, 0
      %p77 = por %p75, %p76
      %s78 = ssub.s32 %s18, %s25
      %p79 = scmp.eq.s32.totalorder %s78, 0
      %s81 = sadd.s32 %s80, 1
      %s82 = scalar_select %p79, %s80, %s81
      %p85 = pneg %p79
      %p86 = scmp.eq.s32.totalorder %s18, 1
      %p87 = por %p85, %p86
      %p88 = scmp.ne.s32.totalorder %s80, %s83
      %p89 = scmp.eq.s32.totalorder %s18, 0
      %p90 = por %p88, %p89
      %p91 = scmp.ne.s32.totalorder %s80, %s83
      %p92 = scmp.eq.s32.totalorder %s23, 1
      %p93 = por %p91, %p92
      %p94 = scmp.ne.s32.totalorder %s83, %s84
      %p95 = scmp.eq.s32.totalorder %s23, 0
      %p96 = por %p94, %p95
      %p97 = scmp.ne.s32.totalorder %s83, %s84
      %p98 = scmp.eq.s32.totalorder %s24, 1
      %p99 = por %p97, %p98
      %p101 = scmp.ne.s32.totalorder %s84, %s100
      %p102 = scmp.eq.s32.totalorder %s24, 0
      %p103 = por %p101, %p102
      %s105 = sadd.s32 %s104, 1
      %p108 = scmp.eq.s32.totalorder %s18, 1
      %p109 = scmp.ne.s32.totalorder %s104, %s106
      %p110 = scmp.eq.s32.totalorder %s18, 0
      %p111 = por %p109, %p110
      %p112 = scmp.ne.s32.totalorder %s104, %s106
      %p113 = scmp.eq.s32.totalorder %s23, 1
      %p114 = por %p112, %p113
      %p115 = scmp.ne.s32.totalorder %s106, %s107
      %p116 = scmp.eq.s32.totalorder %s23, 0
      %p117 = por %p115, %p116
      %p118 = scmp.ne.s32.totalorder %s106, %s107
      %p119 = scmp.eq.s32.totalorder %s24, 1
      %p120 = por %p118, %p119
      %p122 = scmp.ne.s32.totalorder %s107, %s121
      %p123 = scmp.eq.s32.totalorder %s24, 0
      %p124 = por %p122, %p123
      %s126 = sadd.s32 %s125, 1
      %p129 = scmp.eq.s32.totalorder %s18, 1
      %p130 = scmp.ne.s32.totalorder %s125, %s127
      %p131 = scmp.eq.s32.totalorder %s18, 0
      %p132 = por %p130, %p131
      %p133 = scmp.ne.s32.totalorder %s125, %s127
      %p134 = scmp.eq.s32.totalorder %s23, 1
      %p135 = por %p133, %p134
      %p136 = scmp.ne.s32.totalorder %s127, %s128
      %p137 = scmp.eq.s32.totalorder %s23, 0
      %p138 = por %p136, %p137
      %p139 = scmp.ne.s32.totalorder %s127, %s128
      %p140 = scmp.eq.s32.totalorder %s24, 1
      %p141 = por %p139, %p140
      %p143 = scmp.ne.s32.totalorder %s128, %s142
      %p144 = scmp.eq.s32.totalorder %s24, 0
      %p145 = por %p143, %p144
      %s147 = sadd.s32 %s146, 1
      %p150 = scmp.eq.s32.totalorder %s18, 1
      %p151 = scmp.ne.s32.totalorder %s146, %s148
      %p152 = scmp.eq.s32.totalorder %s18, 0
      %p153 = por %p151, %p152
      %p154 = scmp.ne.s32.totalorder %s146, %s148
      %p155 = scmp.eq.s32.totalorder %s23, 1
      %p156 = por %p154, %p155
      %p157 = scmp.ne.s32.totalorder %s148, %s149
      %p158 = scmp.eq.s32.totalorder %s23, 0
      %p159 = por %p157, %p158
      %p160 = scmp.ne.s32.totalorder %s148, %s149
      %p161 = scmp.eq.s32.totalorder %s24, 1
      %p162 = por %p160, %p161
      %p164 = scmp.ne.s32.totalorder %s149, %s163
      %p165 = scmp.eq.s32.totalorder %s24, 0
      %p166 = por %p164, %p165
      %s168 = sadd.s32 %s167, 1
      %p171 = scmp.eq.s32.totalorder %s18, 1
      %p172 = scmp.ne.s32.totalorder %s167, %s169
      %p173 = scmp.eq.s32.totalorder %s18, 0
      %p174 = por %p172, %p173
      %p175 = scmp.ne.s32.totalorder %s167, %s169
      %p176 = scmp.eq.s32.totalorder %s23, 1
      %p177 = por %p175, %p176
      %p178 = scmp.ne.s32.totalorder %s169, %s170
      %p179 = scmp.eq.s32.totalorder %s23, 0
      %p180 = por %p178, %p179
      %p181 = scmp.ne.s32.totalorder %s169, %s170
      %p182 = scmp.eq.s32.totalorder %s24, 1
      %p183 = por %p181, %p182
      %p185 = scmp.ne.s32.totalorder %s170, %s184
      %p186 = scmp.eq.s32.totalorder %s24, 0
      %p187 = por %p185, %p186
      %s189 = sadd.s32 %s188, 1
      %p192 = scmp.eq.s32.totalorder %s18, 1
      %p193 = scmp.ne.s32.totalorder %s188, %s190
      %p194 = scmp.eq.s32.totalorder %s18, 0
      %p195 = por %p193, %p194
      %p196 = scmp.ne.s32.totalorder %s188, %s190
      %p197 = scmp.eq.s32.totalorder %s23, 1
      %p198 = por %p196, %p197
      %p199 = scmp.ne.s32.totalorder %s190, %s191
      %p200 = scmp.eq.s32.totalorder %s23, 0
      %p201 = por %p199, %p200
      %p202 = scmp.ne.s32.totalorder %s190, %s191
      %p203 = scmp.eq.s32.totalorder %s24, 1
      %p204 = por %p202, %p203
      %p206 = scmp.ne.s32.totalorder %s191, %s205
      %p207 = scmp.eq.s32.totalorder %s24, 0
      %p208 = por %p206, %p207
      %s210 = sadd.s32 %s209, 1
      %p213 = scmp.eq.s32.totalorder %s18, 1
      %p214 = scmp.ne.s32.totalorder %s209, %s211
      %p215 = scmp.eq.s32.totalorder %s18, 0
      %p216 = por %p214, %p215
      %p217 = scmp.ne.s32.totalorder %s209, %s211
      %p218 = scmp.eq.s32.totalorder %s23, 1
      %p219 = por %p217, %p218
      %p220 = scmp.ne.s32.totalorder %s211, %s212
      %p221 = scmp.eq.s32.totalorder %s23, 0
      %p222 = por %p220, %p221
      %p223 = scmp.ne.s32.totalorder %s211, %s212
      %p224 = scmp.eq.s32.totalorder %s24, 1
      %p225 = por %p223, %p224
      %p227 = scmp.ne.s32.totalorder %s212, %s226
      %p228 = scmp.eq.s32.totalorder %s24, 0
      %p229 = por %p227, %p228
      %s230 = ssub.s32 %s18, %s25
      %p231 = scmp.eq.s32.totalorder %s230, 0
      %s233 = sadd.s32 %s232, 1
      %s234 = scalar_select %p231, %s232, %s233
      %p237 = pneg %p231
      %p238 = scmp.eq.s32.totalorder %s18, 1
      %p239 = por %p237, %p238
      %p240 = scmp.ne.s32.totalorder %s232, %s235
      %p241 = scmp.eq.s32.totalorder %s18, 0
      %p242 = por %p240, %p241
      %p243 = scmp.ne.s32.totalorder %s232, %s235
      %p244 = scmp.eq.s32.totalorder %s23, 1
      %p245 = por %p243, %p244
      %p246 = scmp.ne.s32.totalorder %s235, %s236
      %p247 = scmp.eq.s32.totalorder %s23, 0
      %p248 = por %p246, %p247
      %p249 = scmp.ne.s32.totalorder %s235, %s236
      %p250 = scmp.eq.s32.totalorder %s24, 1
      %p251 = por %p249, %p250
      %p253 = scmp.ne.s32.totalorder %s236, %s252
      %p254 = scmp.eq.s32.totalorder %s24, 0
      %p255 = por %p253, %p254
      %p256 = scmp.le.s32.totalorder 1, %s18
      %p257 = scmp.lt.s32.totalorder %s18, 3
      %p258 = pnand %p256, %p257
      %p259 = pneg %p258
      // Predicated region
      $region9: #{tpu_custom_call.1} parent=5 // pred_check
        _
      $region10: #{tpu_custom_call.1} parent=5 // pred_check_branch
        %261 = sbr.rel (%p258) target = $region12
      $region11: #{tpu_custom_call.1} parent=5 // pred_region
        %s262 = ssub.s32 %s18, 1
        // Predicated region
        $region13: #{tpu_custom_call.1} parent=11 // pred_check
          %p263 = pneg %p117
        $region14: #{tpu_custom_call.1} parent=11 // pred_check_branch
          %265 = sbr.rel (%p263) target = $region16
        $region15: #{tpu_custom_call.1} parent=11 // pred_region
          _
        $region16: #{tpu_custom_call.1} parent=11 // pred_fallthru
          _
        // Predicated region
        $region17: #{tpu_custom_call.1} parent=11 // pred_check
          %p266 = pneg %p138
        $region18: #{tpu_custom_call.1} parent=11 // pred_check_branch
          %268 = sbr.rel (%p266) target = $region20
        $region19: #{tpu_custom_call.1} parent=11 // pred_region
          _
        $region20: #{tpu_custom_call.1} parent=11 // pred_fallthru
          _
        // Predicated region
        $region21: #{tpu_custom_call.1} parent=11 // pred_check
          %p269 = pneg %p159
        $region22: #{tpu_custom_call.1} parent=11 // pred_check_branch
          %271 = sbr.rel (%p269) target = $region24
        $region23: #{tpu_custom_call.1} parent=11 // pred_region
          _
        $region24: #{tpu_custom_call.1} parent=11 // pred_fallthru
          _
        // Predicated region
        $region25: #{tpu_custom_call.1} parent=11 // pred_check
          %p272 = pneg %p180
        $region26: #{tpu_custom_call.1} parent=11 // pred_check_branch
          %274 = sbr.rel (%p272) target = $region28
        $region27: #{tpu_custom_call.1} parent=11 // pred_region
          _
        $region28: #{tpu_custom_call.1} parent=11 // pred_fallthru
          _
        // Predicated region
        $region29: #{tpu_custom_call.1} parent=11 // pred_check
          %p275 = pneg %p201
        $region30: #{tpu_custom_call.1} parent=11 // pred_check_branch
          %277 = sbr.rel (%p275) target = $region32
        $region31: #{tpu_custom_call.1} parent=11 // pred_region
          _
        $region32: #{tpu_custom_call.1} parent=11 // pred_fallthru
          _
        // Predicated region
        $region33: #{tpu_custom_call.1} parent=11 // pred_check
          %p278 = pneg %p222
        $region34: #{tpu_custom_call.1} parent=11 // pred_check_branch
          %280 = sbr.rel (%p278) target = $region36
        $region35: #{tpu_custom_call.1} parent=11 // pred_region
          _
        $region36: #{tpu_custom_call.1} parent=11 // pred_fallthru
          _
      $region12: #{tpu_custom_call.1} parent=5 // pred_fallthru
        _
      %p281 = scmp.lt.s32.totalorder %s18, 2
      // Predicated region
      $region37: #{tpu_custom_call.1} parent=5 // pred_check
        %p282 = pneg %p281
      $region38: #{tpu_custom_call.1} parent=5 // pred_check_branch
        %284 = sbr.rel (%p282) target = $region40
      $region39: #{tpu_custom_call.1} parent=5 // pred_region
        // Predicated region
        $region41: #{tpu_custom_call.1} parent=39 // pred_check
          %p285 = pneg %p38
        $region42: #{tpu_custom_call.1} parent=39 // pred_check_branch
          %287 = sbr.rel (%p285) target = $region44
        $region43: #{tpu_custom_call.1} parent=39 // pred_region
          %s288 = smul.u32 4, %s18
          %p289 = scmp.lt.s32.totalorder %s288, 7
          %s290 = scalar_select %p289, %s288, 7
          %s291 = smul.addr %s290, 16
          %s292 = smul.addr %s291, 4
          %s293 = scalar_lea.vmem %s0, %s292
          %s294 = smul.u32 4, %s18
        $region44: #{tpu_custom_call.1} parent=39 // pred_fallthru
          _
        // Predicated region
        $region45: #{tpu_custom_call.1} parent=39 // pred_check
          %p295 = pneg %p64
        $region46: #{tpu_custom_call.1} parent=39 // pred_check_branch
          %297 = sbr.rel (%p295) target = $region48
        $region47: #{tpu_custom_call.1} parent=39 // pred_region
          %s298 = smul.u32 4, %s18
          %p299 = scmp.lt.s32.totalorder %s298, 7
          %s300 = scalar_select %p299, %s298, 7
          %s301 = smul.addr %s300, 20
          %s302 = smul.addr %s301, 4
          %s303 = scalar_lea.vmem %s1, %s302
          %s304 = smul.u32 4, %s18
        $region48: #{tpu_custom_call.1} parent=39 // pred_fallthru
          _
        // Predicated region
        $region49: #{tpu_custom_call.1} parent=39 // pred_check
          %p305 = pneg %p90
        $region50: #{tpu_custom_call.1} parent=39 // pred_check_branch
          %307 = sbr.rel (%p305) target = $region52
        $region51: #{tpu_custom_call.1} parent=39 // pred_region
          %s308 = smul.u32 4, %s18
          %p309 = scmp.lt.s32.totalorder %s308, 7
          %s310 = scalar_select %p309, %s308, 7
          %s311 = smul.addr %s310, 2
          %s312 = smul.addr %s311, 4
          %s313 = scalar_lea.vmem %s2, %s312
          %s314 = smul.u32 4, %s18
        $region52: #{tpu_custom_call.1} parent=39 // pred_fallthru
          _
      $region40: #{tpu_custom_call.1} parent=5 // pred_fallthru
        _
      %p315 = scmp.le.s32.totalorder 1, %s18
      %p316 = scmp.lt.s32.totalorder %s18, 3
      %p317 = pnand %p315, %p316
      %p318 = pneg %p317
      // Predicated region
      $region53: #{tpu_custom_call.1} parent=5 // pred_check
        _
      $region54: #{tpu_custom_call.1} parent=5 // pred_check_branch
        %320 = sbr.rel (%p317) target = $region56
      $region55: #{tpu_custom_call.1} parent=5 // pred_region
        %s321 = ssub.s32 %s18, 1
        %s322 = smul.u32 4, %s23
        %p323 = scmp.lt.s32.totalorder %s322, 7
        %s324 = scalar_select %p323, %s322, 7
        %s325 = smul.addr %s324, 16
        %s326 = smul.addr %s325, 4
        %s327 = scalar_lea.vmem %s0, %s326
        %p328 = pneg %p44
        %p329 = pneg %p41
        %s330 = smul.u32 4, %s23
        %p331 = scmp.lt.s32.totalorder %s330, 7
        %s332 = scalar_select %p331, %s330, 7
        %s333 = smul.addr %s332, 20
        %s334 = smul.addr %s333, 4
        %s335 = scalar_lea.vmem %s1, %s334
        %p336 = pneg %p70
        %p337 = pneg %p67
        %s338 = smul.u32 4, %s23
        %p339 = scmp.lt.s32.totalorder %s338, 7
        %s340 = scalar_select %p339, %s338, 7
        %s341 = smul.addr %s340, 2
        %s342 = smul.addr %s341, 4
        %s343 = scalar_lea.vmem %s2, %s342
        %p344 = pneg %p96
        %p345 = pneg %p93
        %p346 = pneg %p117
        %p347 = pneg %p114
        %p348 = pneg %p138
        %p349 = pneg %p135
        %p350 = pneg %p159
        %p351 = pneg %p156
        %p352 = pneg %p180
        %p353 = pneg %p177
        %p354 = pneg %p201
        %p355 = pneg %p198
        %p356 = pneg %p222
        %p357 = pneg %p219
        %p358 = pneg %p248
        %p359 = pneg %p245
        %s360 = sand.u32 %s235, 1
        %s361 = scalar_lea.sflag [#allocation3], %s360
        %s362 = sand.u32 %s235, 1
        %s363 = smul.addr %s362, 128
        %s364 = scalar_lea.vmem [#allocation2], %s363
        %s365 = smul.u32 4, %s23
        %p366 = scmp.lt.s32.totalorder %s365, 7
        %s367 = scalar_select %p366, %s365, 7
        %s368 = smul.addr %s367, 16
        %s369 = smul.addr %s368, 4
        %s370 = scalar_lea.vmem %s0, %s369
        %s371 = smul.u32 4, %s23
        %s372 = smul.u32 4, %s23
        %p373 = scmp.lt.s32.totalorder %s372, 7
        %s374 = scalar_select %p373, %s372, 7
        %s375 = smul.addr %s374, 20
        %s376 = smul.addr %s375, 4
        %s377 = scalar_lea.vmem %s1, %s376
        %s378 = smul.u32 4, %s23
        %s379 = smul.u32 4, %s23
        %p380 = scmp.lt.s32.totalorder %s379, 7
        %s381 = scalar_select %p380, %s379, 7
        %s382 = smul.addr %s381, 2
        %s383 = smul.addr %s382, 4
        %s384 = scalar_lea.vmem %s2, %s383
        %s385 = smul.u32 4, %s23
        %s386 = smul.u32 4, %s23
        %v388 = vld [vmem:[%s370] sm:$0xff]
        %v389 = vld [vmem:[%s370 + $0x8] sm:$0xff]
        %v390 = vld [vmem:[%s370 + $0x10] sm:$0xff]
        %v391 = vld [vmem:[%s370 + $0x18] sm:$0xff]
        %v392 = vld [vmem:[%s370 + $0x20] sm:$0xff]
        %v393 = vld [vmem:[%s370 + $0x28] sm:$0xff]
        %v394 = vld [vmem:[%s370 + $0x30] sm:$0xff]
        %v395 = vld [vmem:[%s370 + $0x38] sm:$0xff]
        %v396 = vld [vmem:[%s377] sm:$0xff]
        %v397 = vld [vmem:[%s377 + $0x8] sm:$0xff]
        %v398 = vld [vmem:[%s377 + $0x10] sm:$0xff]
        %v399 = vld [vmem:[%s377 + $0x18] sm:$0xff]
        %v400 = vld [vmem:[%s377 + $0x20] sm:$0xff]
        %v401 = vld [vmem:[%s377 + $0x28] sm:$0xff]
        %v402 = vld [vmem:[%s377 + $0x30] sm:$0xff]
        %v403 = vld [vmem:[%s377 + $0x38] sm:$0xff]
        %v404 = vld [vmem:[%s377 + $0x40] sm:$0xff]
        %v405 = vld [vmem:[%s377 + $0x48] sm:$0x11]
        %v406 = vld [vmem:[%s384] sm:$0x77]
        %v407 = vxor.u32 %v406, 2147483648
        %v408 = vmul.f32 %v407, 1.442695
        %v409 = vpow.pop %v408
        %v410 = vadd.f32 %v409, 1.0
        %v411 = vrcp.pop %v410
        %v412 = vmul.f32 %v410, %v411
        %v413 = vsub.f32 1.0, %v412
        %v414 = vmul.f32 %v411, %v413
        %v415 = vadd.f32 %v411, %v414
        %vm416 = vweird.f32 %v410
        %vm417 = vweird.f32 %v411
        %vm418 = vmor %vm416, %vm417
        %v419 = vsel %vm418, %v411, %v415
        %v420 = vand.u32 2147483647, %v410
        %vm421 = vcmp.eq.f32.partialorder %v420, 8.507059e+37
        %v422 = vand.u32 %v410, 2147483648
        %v423 = vor.u32 1.1754944e-38, %v422
        %v424 = vsel %vm421, %v423, %v419
        %v425 = vmul.f32 1.0, %v424
        %427 = vst [vmem:[#allocation1] ss:$2 sm:$0xff] %v425
        %v428 = vld.sshfl [vmem:[#allocation1] sm:$0xff pattern:$0x75316420]
        %v429 = vld.sshfl [vmem:[#allocation1 + $0x8] sm:$0xff pattern:$0x75316420]
        %v432 = vpack.c.bf16 %v428, %v428
        %v433 = vpack.c.bf16 %v429, %v429
        %v434 = vld [vmem:[%s3] sm:$0xf]
        %v435 = vld [vmem:[%s3 + $0x4] sm:$0xf]
        %v436 = vld [vmem:[%s3 + $0x8] sm:$0xf]
        %v437 = vld [vmem:[%s3 + $0xc] sm:$0xf]
        %v438 = vld [vmem:[%s4] sm:$0xf]
        %v439 = vld [vmem:[%s4 + $0x4] sm:$0xf]
        %v440 = vld [vmem:[%s4 + $0x8] sm:$0xf]
        %v441 = vld [vmem:[%s4 + $0xc] sm:$0xf]
        %v446 = vunpack.c.l.b16 %v438
        %v447 = vunpack.c.l.b16 %v439
        %v448 = vunpack.c.l.b16 %v440
        %v449 = vunpack.c.l.b16 %v441
        %v450 = vpack.c.b16 %v447, %v446
        %v451 = vpack.c.b16 %v449, %v448
        %v462 = vunpack.c.l.b16 %v396
        %v463 = vunpack.c.h.b16 %v396
        %v464 = vunpack.c.l.b16 %v397
        %v465 = vunpack.c.h.b16 %v397
        %v466 = vunpack.c.l.b16 %v398
        %v467 = vunpack.c.h.b16 %v398
        %v468 = vunpack.c.l.b16 %v399
        %v469 = vunpack.c.h.b16 %v399
        %v470 = vunpack.c.l.b16 %v400
        %v471 = vunpack.c.h.b16 %v400
        %v472 = vunpack.c.l.b16 %v401
        %v473 = vunpack.c.h.b16 %v401
        %v474 = vunpack.c.l.b16 %v402
        %v475 = vunpack.c.h.b16 %v402
        %v476 = vunpack.c.l.b16 %v403
        %v477 = vunpack.c.h.b16 %v403
        %v478 = vunpack.c.l.b16 %v404
        %v479 = vunpack.c.h.b16 %v404
        %v480 = vunpack.c.l.b16 %v405
        %v481 = vunpack.c.h.b16 %v405
        %v482 = vpack.c.b16 %v464, %v462
        %v483 = vpack.c.b16 %v465, %v463
        %v484 = vpack.c.b16 %v468, %v466
        %v485 = vpack.c.b16 %v469, %v467
        %v486 = vpack.c.b16 %v472, %v470
        %v487 = vpack.c.b16 %v473, %v471
        %v488 = vpack.c.b16 %v476, %v474
        %v489 = vpack.c.b16 %v477, %v475
        %v490 = vpack.c.b16 %v480, %v478
        %v491 = vpack.c.b16 %v481, %v479
        %vm500 = vcmask 605184
        %v502 = vsel %vm500, %v450, 0
        %v505 = vsel %vm500, %v451, 0
        %vm507 = vcmask 1044480
        %v509 = vsel %vm507, %v490, 0
        %v512 = vsel %vm507, %v491, 0
        %514 = vmatpush.bf16.msra.mxu0 0
        %515 = vmatpush.bf16.msra.mxu0 0
        %516 = vmatpush.bf16.msra.mxu0 0
        %517 = vmatpush.bf16.msra.mxu0 %v509
        %518 = vmatpush.bf16.msra.mxu0 %v488
        %519 = vmatpush.bf16.msra.mxu0 %v486
        %520 = vmatpush.bf16.msra.mxu0 %v484
        %521 = vmatpush.bf16.msra.mxu0 %v482
        %522 = vmatmul.bf16.gmra.mxu0 %v502
        %v523 = vpop.f32.mrf.mxu0
        %v524 = vadd.f32 0.0, %v523
        %v525 = vpop.f32.mrf.mxu0
        %v526 = vadd.f32 0.0, %v525
        %527 = vmatmul.bf16.gmra.mxu0 %v505
        %v528 = vpop.f32.mrf.mxu0
        %v529 = vadd.f32 0.0, %v528
        %v530 = vpop.f32.mrf.mxu0
        %v531 = vadd.f32 0.0, %v530
        %532 = vdwg.mxu0
        %533 = vmatpush.bf16.msra.mxu0 0
        %534 = vmatpush.bf16.msra.mxu0 0
        %535 = vmatpush.bf16.msra.mxu0 0
        %536 = vmatpush.bf16.msra.mxu0 %v512
        %537 = vmatpush.bf16.msra.mxu0 %v489
        %538 = vmatpush.bf16.msra.mxu0 %v487
        %539 = vmatpush.bf16.msra.mxu0 %v485
        %540 = vmatpush.bf16.msra.mxu0 %v483
        %541 = vmatmul.bf16.gmra.mxu0 %v502
        %v542 = vpop.f32.mrf.mxu0
        %v543 = vadd.f32 0.0, %v542
        %v544 = vpop.f32.mrf.mxu0
        %v545 = vadd.f32 0.0, %v544
        %546 = vmatmul.bf16.gmra.mxu0 %v505
        %v547 = vpop.f32.mrf.mxu0
        %v548 = vadd.f32 0.0, %v547
        %v549 = vpop.f32.mrf.mxu0
        %v550 = vadd.f32 0.0, %v549
        %551 = vdwg.mxu0
        %v556 = vunpack.c.l.b16 %v434
        %v557 = vunpack.c.l.b16 %v435
        %v558 = vunpack.c.l.b16 %v436
        %v559 = vunpack.c.l.b16 %v437
        %v560 = vpack.c.b16 %v557, %v556
        %v561 = vpack.c.b16 %v559, %v558
        %v570 = vunpack.c.l.b16 %v388
        %v571 = vunpack.c.h.b16 %v388
        %v572 = vunpack.c.l.b16 %v389
        %v573 = vunpack.c.h.b16 %v389
        %v574 = vunpack.c.l.b16 %v390
        %v575 = vunpack.c.h.b16 %v390
        %v576 = vunpack.c.l.b16 %v391
        %v577 = vunpack.c.h.b16 %v391
        %v578 = vunpack.c.l.b16 %v392
        %v579 = vunpack.c.h.b16 %v392
        %v580 = vunpack.c.l.b16 %v393
        %v581 = vunpack.c.h.b16 %v393
        %v582 = vunpack.c.l.b16 %v394
        %v583 = vunpack.c.h.b16 %v394
        %v584 = vunpack.c.l.b16 %v395
        %v585 = vunpack.c.h.b16 %v395
        %v586 = vpack.c.b16 %v572, %v570
        %v587 = vpack.c.b16 %v573, %v571
        %v588 = vpack.c.b16 %v576, %v574
        %v589 = vpack.c.b16 %v577, %v575
        %v590 = vpack.c.b16 %v580, %v578
        %v591 = vpack.c.b16 %v581, %v579
        %v592 = vpack.c.b16 %v584, %v582
        %v593 = vpack.c.b16 %v585, %v583
        %vm602 = vcmask 523264
        %v604 = vsel %vm602, %v560, 0
        %v607 = vsel %vm602, %v561, 0
        %609 = vmatpush.bf16.msra.mxu0 0
        %610 = vmatpush.bf16.msra.mxu0 0
        %611 = vmatpush.bf16.msra.mxu0 0
        %612 = vmatpush.bf16.msra.mxu0 0
        %613 = vmatpush.bf16.msra.mxu0 %v592
        %614 = vmatpush.bf16.msra.mxu0 %v590
        %615 = vmatpush.bf16.msra.mxu0 %v588
        %616 = vmatpush.bf16.msra.mxu0 %v586
        %617 = vmatmul.bf16.gmra.mxu0 %v604
        %v618 = vpop.f32.mrf.mxu0
        %v619 = vadd.f32 %v524, %v618
        %v620 = vpop.f32.mrf.mxu0
        %v621 = vadd.f32 %v526, %v620
        %622 = vmatmul.bf16.gmra.mxu0 %v607
        %v623 = vpop.f32.mrf.mxu0
        %v624 = vadd.f32 %v529, %v623
        %v625 = vpop.f32.mrf.mxu0
        %v626 = vadd.f32 %v531, %v625
        %627 = vdwg.mxu0
        %628 = vmatpush.bf16.msra.mxu0 0
        %629 = vmatpush.bf16.msra.mxu0 0
        %630 = vmatpush.bf16.msra.mxu0 0
        %631 = vmatpush.bf16.msra.mxu0 0
        %632 = vmatpush.bf16.msra.mxu0 %v593
        %633 = vmatpush.bf16.msra.mxu0 %v591
        %634 = vmatpush.bf16.msra.mxu0 %v589
        %635 = vmatpush.bf16.msra.mxu0 %v587
        %636 = vmatmul.bf16.gmra.mxu0 %v604
        %v637 = vpop.f32.mrf.mxu0
        %v638 = vadd.f32 %v543, %v637
        %v639 = vpop.f32.mrf.mxu0
        %v640 = vadd.f32 %v545, %v639
        %641 = vmatmul.bf16.gmra.mxu0 %v607
        %v642 = vpop.f32.mrf.mxu0
        %v643 = vadd.f32 %v548, %v642
        %v644 = vpop.f32.mrf.mxu0
        %v645 = vadd.f32 %v550, %v644
        %646 = vdwg.mxu0
        %v647 = vld [vmem:[%s5] sm:$0xf]
        %v648 = vld [vmem:[%s5 + $0x4] sm:$0xf]
        %v649 = vld [vmem:[%s5 + $0x8] sm:$0xf]
        %v650 = vld [vmem:[%s5 + $0xc] sm:$0xf]
        %v655 = vunpack.c.l.b16 %v647
        %v656 = vunpack.c.l.b16 %v648
        %v657 = vunpack.c.l.b16 %v649
        %v658 = vunpack.c.l.b16 %v650
        %v659 = vpack.c.b16 %v656, %v655
        %v660 = vpack.c.b16 %v658, %v657
        %vm661 = vcmask 23552
        %v663 = vsel %vm661, %v659, 0
        %v666 = vsel %vm661, %v660, 0
        %vm668 = vcmask 1040384
        %vm669 = vcmask 1041408
        %v670 = vsel %vm668, 4294967295, 65535
        %v671 = vsel %vm669, %v670, 0
        %v673 = vand.u32 %v432, %v671
        %v676 = vand.u32 %v433, %v671
        %678 = vmatpush.bf16.msra.mxu0 0
        %679 = vmatpush.bf16.msra.mxu0 0
        %680 = vmatpush.bf16.msra.mxu0 0
        %681 = vmatpush.bf16.msra.mxu0 0
        %682 = vmatpush.bf16.msra.mxu0 0
        %683 = vmatpush.bf16.msra.mxu0 0
        %684 = vmatpush.bf16.msra.mxu0 0
        %685 = vmatpush.bf16.msra.mxu0 %v673
        %686 = vmatmul.bf16.gmra.mxu0 %v663
        %v687 = vpop.f32.mrf.mxu0
        %v688 = vadd.f32 0.0, %v687
        %v689 = vpop.f32.mrf.mxu0
        %v690 = vadd.f32 0.0, %v689
        %691 = vmatmul.bf16.gmra.mxu0 %v666
        %v692 = vpop.f32.mrf.mxu0
        %v693 = vadd.f32 0.0, %v692
        %v694 = vpop.f32.mrf.mxu0
        %v695 = vadd.f32 0.0, %v694
        %696 = vdwg.mxu0
        %697 = vmatpush.bf16.msra.mxu0 0
        %698 = vmatpush.bf16.msra.mxu0 0
        %699 = vmatpush.bf16.msra.mxu0 0
        %700 = vmatpush.bf16.msra.mxu0 0
        %701 = vmatpush.bf16.msra.mxu0 0
        %702 = vmatpush.bf16.msra.mxu0 0
        %703 = vmatpush.bf16.msra.mxu0 0
        %704 = vmatpush.bf16.msra.mxu0 %v676
        %705 = vmatmul.bf16.gmra.mxu0 %v663
        %v706 = vpop.f32.mrf.mxu0
        %v707 = vadd.f32 0.0, %v706
        %v708 = vpop.f32.mrf.mxu0
        %v709 = vadd.f32 0.0, %v708
        %710 = vmatmul.bf16.gmra.mxu0 %v666
        %v711 = vpop.f32.mrf.mxu0
        %v712 = vadd.f32 0.0, %v711
        %v713 = vpop.f32.mrf.mxu0
        %v714 = vadd.f32 0.0, %v713
        %715 = vdwg.mxu0
        %v716 = vadd.f32 %v619, %v688
        %v717 = vadd.f32 %v638, %v707
        %v718 = vadd.f32 %v621, %v690
        %v719 = vadd.f32 %v640, %v709
        %v720 = vadd.f32 %v624, %v693
        %v721 = vadd.f32 %v643, %v712
        %v722 = vadd.f32 %v626, %v695
        %v723 = vadd.f32 %v645, %v714
        %v724 = vld [vmem:[%s6] sm:$0xff]
        %v725 = vld [vmem:[%s6 + $0x8] sm:$0xff]
        %v726 = vld [vmem:[%s6 + $0x10] sm:$0xff]
        %v727 = vld [vmem:[%s6 + $0x18] sm:$0xff]
        %729 = vset.pattern.permute.xlu0 0
        %730 = vperm.xlu0 %729, %v724
        %v731 = vpop.permute.xlu0 %730
        %734 = vset.pattern.permute.xlu0 0
        %735 = vperm.xlu0 %734, %v725
        %v736 = vpop.permute.xlu0 %735
        %739 = vset.pattern.permute.xlu0 0
        %740 = vperm.xlu0 %739, %v726
        %v741 = vpop.permute.xlu0 %740
        %744 = vset.pattern.permute.xlu0 0
        %745 = vperm.xlu0 %744, %v727
        %v746 = vpop.permute.xlu0 %745
        %v748 = vadd.f32 %v716, %v731
        %v749 = vadd.f32 %v717, %v731
        %v750 = vadd.f32 %v718, %v736
        %v751 = vadd.f32 %v719, %v736
        %v752 = vadd.f32 %v720, %v741
        %v753 = vadd.f32 %v721, %v741
        %v754 = vadd.f32 %v722, %v746
        %v755 = vadd.f32 %v723, %v746
        %vm756 = vcmp.gt.f32.partialorder %v748, 0.0
        %vm757 = vcmp.gt.f32.partialorder %v749, 0.0
        %vm758 = vcmp.gt.f32.partialorder %v750, 0.0
        %vm759 = vcmp.gt.f32.partialorder %v751, 0.0
        %vm760 = vcmp.gt.f32.partialorder %v752, 0.0
        %vm761 = vcmp.gt.f32.partialorder %v753, 0.0
        %vm762 = vcmp.gt.f32.partialorder %v754, 0.0
        %vm763 = vcmp.gt.f32.partialorder %v755, 0.0
        %v764 = vmul.f32 %v748, 0.01
        %v765 = vmul.f32 %v749, 0.01
        %v766 = vmul.f32 %v750, 0.01
        %v767 = vmul.f32 %v751, 0.01
        %v768 = vmul.f32 %v752, 0.01
        %v769 = vmul.f32 %v753, 0.01
        %v770 = vmul.f32 %v754, 0.01
        %v771 = vmul.f32 %v755, 0.01
        %v772 = vsel %vm756, %v748, %v764
        %v773 = vsel %vm757, %v749, %v765
        %v774 = vsel %vm758, %v750, %v766
        %v775 = vsel %vm759, %v751, %v767
        %v776 = vsel %vm760, %v752, %v768
        %v777 = vsel %vm761, %v753, %v769
        %v778 = vsel %vm762, %v754, %v770
        %v779 = vsel %vm763, %v755, %v771
        %v780 = vld [vmem:[%s7] sm:$0xf]
        %v781 = vld [vmem:[%s7 + $0x4] sm:$0xf]
        %v782 = vpack.c.bf16 %v774, %v772
        %v783 = vpack.c.bf16 %v775, %v773
        %v784 = vpack.c.bf16 %v778, %v776
        %v785 = vpack.c.bf16 %v779, %v777
        %v786 = vld [vmem:[%s8] sm:$0xff]
        %v787 = vld [vmem:[%s8 + $0x8] sm:$0xff]
        %789 = vset.pattern.permute.xlu0 0
        %790 = vperm.xlu0 %789, %v786
        %v791 = vpop.permute.xlu0 %790
        %794 = vset.pattern.permute.xlu0 0
        %795 = vperm.xlu0 %794, %v787
        %v796 = vpop.permute.xlu0 %795
        %v800 = vunpack.c.l.b16 %v780
        %v801 = vunpack.c.l.b16 %v781
        %v802 = vpack.c.b16 %v801, %v800
        %vm803 = vcmask 261120
        %v805 = vsel %vm803, %v802, 0
        %807 = vmatpush.bf16.msra.mxu0 0
        %808 = vmatpush.bf16.msra.mxu0 0
        %809 = vmatpush.bf16.msra.mxu0 0
        %810 = vmatpush.bf16.msra.mxu0 0
        %811 = vmatpush.bf16.msra.mxu0 0
        %812 = vmatpush.bf16.msra.mxu0 0
        %813 = vmatpush.bf16.msra.mxu0 %v784
        %814 = vmatpush.bf16.msra.mxu0 %v782
        %815 = vmatmul.bf16.gmra.mxu0 %v805
        %v816 = vpop.f32.mrf.mxu0
        %v817 = vadd.f32 %v791, %v816
        %v818 = vpop.f32.mrf.mxu0
        %v819 = vadd.f32 %v796, %v818
        %820 = vdwg.mxu0
        %821 = vmatpush.bf16.msra.mxu0 0
        %822 = vmatpush.bf16.msra.mxu0 0
        %823 = vmatpush.bf16.msra.mxu0 0
        %824 = vmatpush.bf16.msra.mxu0 0
        %825 = vmatpush.bf16.msra.mxu0 0
        %826 = vmatpush.bf16.msra.mxu0 0
        %827 = vmatpush.bf16.msra.mxu0 %v785
        %828 = vmatpush.bf16.msra.mxu0 %v783
        %829 = vmatmul.bf16.gmra.mxu0 %v805
        %v830 = vpop.f32.mrf.mxu0
        %v831 = vadd.f32 %v791, %v830
        %v832 = vpop.f32.mrf.mxu0
        %v833 = vadd.f32 %v796, %v832
        %834 = vdwg.mxu0
        %vm835 = vcmp.gt.f32.partialorder %v817, 0.0
        %vm836 = vcmp.gt.f32.partialorder %v831, 0.0
        %vm837 = vcmp.gt.f32.partialorder %v819, 0.0
        %vm838 = vcmp.gt.f32.partialorder %v833, 0.0
        %v839 = vmul.f32 %v817, 0.01
        %v840 = vmul.f32 %v831, 0.01
        %v841 = vmul.f32 %v819, 0.01
        %v842 = vmul.f32 %v833, 0.01
        %v843 = vsel %vm835, %v817, %v839
        %v844 = vsel %vm836, %v831, %v840
        %v845 = vsel %vm837, %v819, %v841
        %v846 = vsel %vm838, %v833, %v842
        %847 = vst [vmem:[%s364] sm:$0xff] %v843
        %848 = vst [vmem:[%s364 + $0x8] sm:$0xff] %v844
        %849 = vst [vmem:[%s364 + $0x10] sm:$0xff] %v845
        %850 = vst [vmem:[%s364 + $0x18] sm:$0xff] %v846
        %s851 = scalar_lea.vmem %s370, 64
        %v852 = vld [vmem:[%s851] sm:$0xff]
        %v853 = vld [vmem:[%s851 + $0x8] sm:$0xff]
        %v854 = vld [vmem:[%s851 + $0x10] sm:$0xff]
        %v855 = vld [vmem:[%s851 + $0x18] sm:$0xff]
        %v856 = vld [vmem:[%s851 + $0x20] sm:$0xff]
        %v857 = vld [vmem:[%s851 + $0x28] sm:$0xff]
        %v858 = vld [vmem:[%s851 + $0x30] sm:$0xff]
        %v859 = vld [vmem:[%s851 + $0x38] sm:$0xff]
        %s860 = scalar_lea.vmem %s377, 80
        %v861 = vld [vmem:[%s860] sm:$0xff]
        %v862 = vld [vmem:[%s860 + $0x8] sm:$0xff]
        %v863 = vld [vmem:[%s860 + $0x10] sm:$0xff]
        %v864 = vld [vmem:[%s860 + $0x18] sm:$0xff]
        %v865 = vld [vmem:[%s860 + $0x20] sm:$0xff]
        %v866 = vld [vmem:[%s860 + $0x28] sm:$0xff]
        %v867 = vld [vmem:[%s860 + $0x30] sm:$0xff]
        %v868 = vld [vmem:[%s860 + $0x38] sm:$0xff]
        %v869 = vld [vmem:[%s860 + $0x40] sm:$0xff]
        %v870 = vld [vmem:[%s860 + $0x48] sm:$0x11]
        %s871 = scalar_lea.vmem %s384, 8
        %v872 = vld [vmem:[%s871] sm:$0x77]
        %v873 = vxor.u32 %v872, 2147483648
        %v874 = vmul.f32 %v873, 1.442695
        %v875 = vpow.pop %v874
        %v876 = vadd.f32 %v875, 1.0
        %v877 = vrcp.pop %v876
        %v878 = vmul.f32 %v876, %v877
        %v879 = vsub.f32 1.0, %v878
        %v880 = vmul.f32 %v877, %v879
        %v881 = vadd.f32 %v877, %v880
        %vm882 = vweird.f32 %v876
        %vm883 = vweird.f32 %v877
        %vm884 = vmor %vm882, %vm883
        %v885 = vsel %vm884, %v877, %v881
        %v886 = vand.u32 2147483647, %v876
        %vm887 = vcmp.eq.f32.partialorder %v886, 8.507059e+37
        %v888 = vand.u32 %v876, 2147483648
        %v889 = vor.u32 1.1754944e-38, %v888
        %v890 = vsel %vm887, %v889, %v885
        %v891 = vmul.f32 1.0, %v890
        %893 = vst [vmem:[#allocation1] ss:$2 sm:$0xff] %v891
        %v894 = vld.sshfl [vmem:[#allocation1] sm:$0xff pattern:$0x75316420]
        %v895 = vld.sshfl [vmem:[#allocation1 + $0x8] sm:$0xff pattern:$0x75316420]
        %v898 = vpack.c.bf16 %v894, %v894
        %v899 = vpack.c.bf16 %v895, %v895
        %v900 = vld [vmem:[%s3] sm:$0xf]
        %v901 = vld [vmem:[%s3 + $0x4] sm:$0xf]
        %v902 = vld [vmem:[%s3 + $0x8] sm:$0xf]
        %v903 = vld [vmem:[%s3 + $0xc] sm:$0xf]
        %v904 = vld [vmem:[%s4] sm:$0xf]
        %v905 = vld [vmem:[%s4 + $0x4] sm:$0xf]
        %v906 = vld [vmem:[%s4 + $0x8] sm:$0xf]
        %v907 = vld [vmem:[%s4 + $0xc] sm:$0xf]
        %v912 = vunpack.c.l.b16 %v904
        %v913 = vunpack.c.l.b16 %v905
        %v914 = vunpack.c.l.b16 %v906
        %v915 = vunpack.c.l.b16 %v907
        %v916 = vpack.c.b16 %v913, %v912
        %v917 = vpack.c.b16 %v915, %v914
        %v928 = vunpack.c.l.b16 %v861
        %v929 = vunpack.c.h.b16 %v861
        %v930 = vunpack.c.l.b16 %v862
        %v931 = vunpack.c.h.b16 %v862
        %v932 = vunpack.c.l.b16 %v863
        %v933 = vunpack.c.h.b16 %v863
        %v934 = vunpack.c.l.b16 %v864
        %v935 = vunpack.c.h.b16 %v864
        %v936 = vunpack.c.l.b16 %v865
        %v937 = vunpack.c.h.b16 %v865
        %v938 = vunpack.c.l.b16 %v866
        %v939 = vunpack.c.h.b16 %v866
        %v940 = vunpack.c.l.b16 %v867
        %v941 = vunpack.c.h.b16 %v867
        %v942 = vunpack.c.l.b16 %v868
        %v943 = vunpack.c.h.b16 %v868
        %v944 = vunpack.c.l.b16 %v869
        %v945 = vunpack.c.h.b16 %v869
        %v946 = vunpack.c.l.b16 %v870
        %v947 = vunpack.c.h.b16 %v870
        %v948 = vpack.c.b16 %v930, %v928
        %v949 = vpack.c.b16 %v931, %v929
        %v950 = vpack.c.b16 %v934, %v932
        %v951 = vpack.c.b16 %v935, %v933
        %v952 = vpack.c.b16 %v938, %v936
        %v953 = vpack.c.b16 %v939, %v937
        %v954 = vpack.c.b16 %v942, %v940
        %v955 = vpack.c.b16 %v943, %v941
        %v956 = vpack.c.b16 %v946, %v944
        %v957 = vpack.c.b16 %v947, %v945
        %v967 = vsel %vm500, %v916, 0
        %v970 = vsel %vm500, %v917, 0
        %v973 = vsel %vm507, %v956, 0
        %v976 = vsel %vm507, %v957, 0
        %978 = vmatpush.bf16.msra.mxu0 0
        %979 = vmatpush.bf16.msra.mxu0 0
        %980 = vmatpush.bf16.msra.mxu0 0
        %981 = vmatpush.bf16.msra.mxu0 %v973
        %982 = vmatpush.bf16.msra.mxu0 %v954
        %983 = vmatpush.bf16.msra.mxu0 %v952
        %984 = vmatpush.bf16.msra.mxu0 %v950
        %985 = vmatpush.bf16.msra.mxu0 %v948
        %986 = vmatmul.bf16.gmra.mxu0 %v967
        %v987 = vpop.f32.mrf.mxu0
        %v988 = vadd.f32 0.0, %v987
        %v989 = vpop.f32.mrf.mxu0
        %v990 = vadd.f32 0.0, %v989
        %991 = vmatmul.bf16.gmra.mxu0 %v970
        %v992 = vpop.f32.mrf.mxu0
        %v993 = vadd.f32 0.0, %v992
        %v994 = vpop.f32.mrf.mxu0
        %v995 = vadd.f32 0.0, %v994
        %996 = vdwg.mxu0
        %997 = vmatpush.bf16.msra.mxu0 0
        %998 = vmatpush.bf16.msra.mxu0 0
        %999 = vmatpush.bf16.msra.mxu0 0
        %1000 = vmatpush.bf16.msra.mxu0 %v976
        %1001 = vmatpush.bf16.msra.mxu0 %v955
        %1002 = vmatpush.bf16.msra.mxu0 %v953
        %1003 = vmatpush.bf16.msra.mxu0 %v951
        %1004 = vmatpush.bf16.msra.mxu0 %v949
        %1005 = vmatmul.bf16.gmra.mxu0 %v967
        %v1006 = vpop.f32.mrf.mxu0
        %v1007 = vadd.f32 0.0, %v1006
        %v1008 = vpop.f32.mrf.mxu0
        %v1009 = vadd.f32 0.0, %v1008
        %1010 = vmatmul.bf16.gmra.mxu0 %v970
        %v1011 = vpop.f32.mrf.mxu0
        %v1012 = vadd.f32 0.0, %v1011
        %v1013 = vpop.f32.mrf.mxu0
        %v1014 = vadd.f32 0.0, %v1013
        %1015 = vdwg.mxu0
        %v1020 = vunpack.c.l.b16 %v900
        %v1021 = vunpack.c.l.b16 %v901
        %v1022 = vunpack.c.l.b16 %v902
        %v1023 = vunpack.c.l.b16 %v903
        %v1024 = vpack.c.b16 %v1021, %v1020
        %v1025 = vpack.c.b16 %v1023, %v1022
        %v1034 = vunpack.c.l.b16 %v852
        %v1035 = vunpack.c.h.b16 %v852
        %v1036 = vunpack.c.l.b16 %v853
        %v1037 = vunpack.c.h.b16 %v853
        %v1038 = vunpack.c.l.b16 %v854
        %v1039 = vunpack.c.h.b16 %v854
        %v1040 = vunpack.c.l.b16 %v855
        %v1041 = vunpack.c.h.b16 %v855
        %v1042 = vunpack.c.l.b16 %v856
        %v1043 = vunpack.c.h.b16 %v856
        %v1044 = vunpack.c.l.b16 %v857
        %v1045 = vunpack.c.h.b16 %v857
        %v1046 = vunpack.c.l.b16 %v858
        %v1047 = vunpack.c.h.b16 %v858
        %v1048 = vunpack.c.l.b16 %v859
        %v1049 = vunpack.c.h.b16 %v859
        %v1050 = vpack.c.b16 %v1036, %v1034
        %v1051 = vpack.c.b16 %v1037, %v1035
        %v1052 = vpack.c.b16 %v1040, %v1038
        %v1053 = vpack.c.b16 %v1041, %v1039
        %v1054 = vpack.c.b16 %v1044, %v1042
        %v1055 = vpack.c.b16 %v1045, %v1043
        %v1056 = vpack.c.b16 %v1048, %v1046
        %v1057 = vpack.c.b16 %v1049, %v1047
        %v1067 = vsel %vm602, %v1024, 0
        %v1070 = vsel %vm602, %v1025, 0
        %1072 = vmatpush.bf16.msra.mxu0 0
        %1073 = vmatpush.bf16.msra.mxu0 0
        %1074 = vmatpush.bf16.msra.mxu0 0
        %1075 = vmatpush.bf16.msra.mxu0 0
        %1076 = vmatpush.bf16.msra.mxu0 %v1056
        %1077 = vmatpush.bf16.msra.mxu0 %v1054
        %1078 = vmatpush.bf16.msra.mxu0 %v1052
        %1079 = vmatpush.bf16.msra.mxu0 %v1050
        %1080 = vmatmul.bf16.gmra.mxu0 %v1067
        %v1081 = vpop.f32.mrf.mxu0
        %v1082 = vadd.f32 %v988, %v1081
        %v1083 = vpop.f32.mrf.mxu0
        %v1084 = vadd.f32 %v990, %v1083
        %1085 = vmatmul.bf16.gmra.mxu0 %v1070
        %v1086 = vpop.f32.mrf.mxu0
        %v1087 = vadd.f32 %v993, %v1086
        %v1088 = vpop.f32.mrf.mxu0
        %v1089 = vadd.f32 %v995, %v1088
        %1090 = vdwg.mxu0
        %1091 = vmatpush.bf16.msra.mxu0 0
        %1092 = vmatpush.bf16.msra.mxu0 0
        %1093 = vmatpush.bf16.msra.mxu0 0
        %1094 = vmatpush.bf16.msra.mxu0 0
        %1095 = vmatpush.bf16.msra.mxu0 %v1057
        %1096 = vmatpush.bf16.msra.mxu0 %v1055
        %1097 = vmatpush.bf16.msra.mxu0 %v1053
        %1098 = vmatpush.bf16.msra.mxu0 %v1051
        %1099 = vmatmul.bf16.gmra.mxu0 %v1067
        %v1100 = vpop.f32.mrf.mxu0
        %v1101 = vadd.f32 %v1007, %v1100
        %v1102 = vpop.f32.mrf.mxu0
        %v1103 = vadd.f32 %v1009, %v1102
        %1104 = vmatmul.bf16.gmra.mxu0 %v1070
        %v1105 = vpop.f32.mrf.mxu0
        %v1106 = vadd.f32 %v1012, %v1105
        %v1107 = vpop.f32.mrf.mxu0
        %v1108 = vadd.f32 %v1014, %v1107
        %1109 = vdwg.mxu0
        %v1110 = vld [vmem:[%s5] sm:$0xf]
        %v1111 = vld [vmem:[%s5 + $0x4] sm:$0xf]
        %v1112 = vld [vmem:[%s5 + $0x8] sm:$0xf]
        %v1113 = vld [vmem:[%s5 + $0xc] sm:$0xf]
        %v1118 = vunpack.c.l.b16 %v1110
        %v1119 = vunpack.c.l.b16 %v1111
        %v1120 = vunpack.c.l.b16 %v1112
        %v1121 = vunpack.c.l.b16 %v1113
        %v1122 = vpack.c.b16 %v1119, %v1118
        %v1123 = vpack.c.b16 %v1121, %v1120
        %v1125 = vsel %vm661, %v1122, 0
        %v1128 = vsel %vm661, %v1123, 0
        %v1131 = vand.u32 %v898, %v671
        %v1134 = vand.u32 %v899, %v671
        %1136 = vmatpush.bf16.msra.mxu0 0
        %1137 = vmatpush.bf16.msra.mxu0 0
        %1138 = vmatpush.bf16.msra.mxu0 0
        %1139 = vmatpush.bf16.msra.mxu0 0
        %1140 = vmatpush.bf16.msra.mxu0 0
        %1141 = vmatpush.bf16.msra.mxu0 0
        %1142 = vmatpush.bf16.msra.mxu0 0
        %1143 = vmatpush.bf16.msra.mxu0 %v1131
        %1144 = vmatmul.bf16.gmra.mxu0 %v1125
        %v1145 = vpop.f32.mrf.mxu0
        %v1146 = vadd.f32 0.0, %v1145
        %v1147 = vpop.f32.mrf.mxu0
        %v1148 = vadd.f32 0.0, %v1147
        %1149 = vmatmul.bf16.gmra.mxu0 %v1128
        %v1150 = vpop.f32.mrf.mxu0
        %v1151 = vadd.f32 0.0, %v1150
        %v1152 = vpop.f32.mrf.mxu0
        %v1153 = vadd.f32 0.0, %v1152
        %1154 = vdwg.mxu0
        %1155 = vmatpush.bf16.msra.mxu0 0
        %1156 = vmatpush.bf16.msra.mxu0 0
        %1157 = vmatpush.bf16.msra.mxu0 0
        %1158 = vmatpush.bf16.msra.mxu0 0
        %1159 = vmatpush.bf16.msra.mxu0 0
        %1160 = vmatpush.bf16.msra.mxu0 0
        %1161 = vmatpush.bf16.msra.mxu0 0
        %1162 = vmatpush.bf16.msra.mxu0 %v1134
        %1163 = vmatmul.bf16.gmra.mxu0 %v1125
        %v1164 = vpop.f32.mrf.mxu0
        %v1165 = vadd.f32 0.0, %v1164
        %v1166 = vpop.f32.mrf.mxu0
        %v1167 = vadd.f32 0.0, %v1166
        %1168 = vmatmul.bf16.gmra.mxu0 %v1128
        %v1169 = vpop.f32.mrf.mxu0
        %v1170 = vadd.f32 0.0, %v1169
        %v1171 = vpop.f32.mrf.mxu0
        %v1172 = vadd.f32 0.0, %v1171
        %1173 = vdwg.mxu0
        %v1174 = vadd.f32 %v1082, %v1146
        %v1175 = vadd.f32 %v1101, %v1165
        %v1176 = vadd.f32 %v1084, %v1148
        %v1177 = vadd.f32 %v1103, %v1167
        %v1178 = vadd.f32 %v1087, %v1151
        %v1179 = vadd.f32 %v1106, %v1170
        %v1180 = vadd.f32 %v1089, %v1153
        %v1181 = vadd.f32 %v1108, %v1172
        %v1182 = vld [vmem:[%s6] sm:$0xff]
        %v1183 = vld [vmem:[%s6 + $0x8] sm:$0xff]
        %v1184 = vld [vmem:[%s6 + $0x10] sm:$0xff]
        %v1185 = vld [vmem:[%s6 + $0x18] sm:$0xff]
        %1187 = vset.pattern.permute.xlu0 0
        %1188 = vperm.xlu0 %1187, %v1182
        %v1189 = vpop.permute.xlu0 %1188
        %1192 = vset.pattern.permute.xlu0 0
        %1193 = vperm.xlu0 %1192, %v1183
        %v1194 = vpop.permute.xlu0 %1193
        %1197 = vset.pattern.permute.xlu0 0
        %1198 = vperm.xlu0 %1197, %v1184
        %v1199 = vpop.permute.xlu0 %1198
        %1202 = vset.pattern.permute.xlu0 0
        %1203 = vperm.xlu0 %1202, %v1185
        %v1204 = vpop.permute.xlu0 %1203
        %v1206 = vadd.f32 %v1174, %v1189
        %v1207 = vadd.f32 %v1175, %v1189
        %v1208 = vadd.f32 %v1176, %v1194
        %v1209 = vadd.f32 %v1177, %v1194
        %v1210 = vadd.f32 %v1178, %v1199
        %v1211 = vadd.f32 %v1179, %v1199
        %v1212 = vadd.f32 %v1180, %v1204
        %v1213 = vadd.f32 %v1181, %v1204
        %vm1214 = vcmp.gt.f32.partialorder %v1206, 0.0
        %vm1215 = vcmp.gt.f32.partialorder %v1207, 0.0
        %vm1216 = vcmp.gt.f32.partialorder %v1208, 0.0
        %vm1217 = vcmp.gt.f32.partialorder %v1209, 0.0
        %vm1218 = vcmp.gt.f32.partialorder %v1210, 0.0
        %vm1219 = vcmp.gt.f32.partialorder %v1211, 0.0
        %vm1220 = vcmp.gt.f32.partialorder %v1212, 0.0
        %vm1221 = vcmp.gt.f32.partialorder %v1213, 0.0
        %v1222 = vmul.f32 %v1206, 0.01
        %v1223 = vmul.f32 %v1207, 0.01
        %v1224 = vmul.f32 %v1208, 0.01
        %v1225 = vmul.f32 %v1209, 0.01
        %v1226 = vmul.f32 %v1210, 0.01
        %v1227 = vmul.f32 %v1211, 0.01
        %v1228 = vmul.f32 %v1212, 0.01
        %v1229 = vmul.f32 %v1213, 0.01
        %v1230 = vsel %vm1214, %v1206, %v1222
        %v1231 = vsel %vm1215, %v1207, %v1223
        %v1232 = vsel %vm1216, %v1208, %v1224
        %v1233 = vsel %vm1217, %v1209, %v1225
        %v1234 = vsel %vm1218, %v1210, %v1226
        %v1235 = vsel %vm1219, %v1211, %v1227
        %v1236 = vsel %vm1220, %v1212, %v1228
        %v1237 = vsel %vm1221, %v1213, %v1229
        %v1238 = vld [vmem:[%s7] sm:$0xf]
        %v1239 = vld [vmem:[%s7 + $0x4] sm:$0xf]
        %v1240 = vpack.c.bf16 %v1232, %v1230
        %v1241 = vpack.c.bf16 %v1233, %v1231
        %v1242 = vpack.c.bf16 %v1236, %v1234
        %v1243 = vpack.c.bf16 %v1237, %v1235
        %v1244 = vld [vmem:[%s8] sm:$0xff]
        %v1245 = vld [vmem:[%s8 + $0x8] sm:$0xff]
        %1247 = vset.pattern.permute.xlu0 0
        %1248 = vperm.xlu0 %1247, %v1244
        %v1249 = vpop.permute.xlu0 %1248
        %1252 = vset.pattern.permute.xlu0 0
        %1253 = vperm.xlu0 %1252, %v1245
        %v1254 = vpop.permute.xlu0 %1253
        %v1258 = vunpack.c.l.b16 %v1238
        %v1259 = vunpack.c.l.b16 %v1239
        %v1260 = vpack.c.b16 %v1259, %v1258
        %v1262 = vsel %vm803, %v1260, 0
        %1264 = vmatpush.bf16.msra.mxu0 0
        %1265 = vmatpush.bf16.msra.mxu0 0
        %1266 = vmatpush.bf16.msra.mxu0 0
        %1267 = vmatpush.bf16.msra.mxu0 0
        %1268 = vmatpush.bf16.msra.mxu0 0
        %1269 = vmatpush.bf16.msra.mxu0 0
        %1270 = vmatpush.bf16.msra.mxu0 %v1242
        %1271 = vmatpush.bf16.msra.mxu0 %v1240
        %1272 = vmatmul.bf16.gmra.mxu0 %v1262
        %v1273 = vpop.f32.mrf.mxu0
        %v1274 = vadd.f32 %v1249, %v1273
        %v1275 = vpop.f32.mrf.mxu0
        %v1276 = vadd.f32 %v1254, %v1275
        %1277 = vdwg.mxu0
        %1278 = vmatpush.bf16.msra.mxu0 0
        %1279 = vmatpush.bf16.msra.mxu0 0
        %1280 = vmatpush.bf16.msra.mxu0 0
        %1281 = vmatpush.bf16.msra.mxu0 0
        %1282 = vmatpush.bf16.msra.mxu0 0
        %1283 = vmatpush.bf16.msra.mxu0 0
        %1284 = vmatpush.bf16.msra.mxu0 %v1243
        %1285 = vmatpush.bf16.msra.mxu0 %v1241
        %1286 = vmatmul.bf16.gmra.mxu0 %v1262
        %v1287 = vpop.f32.mrf.mxu0
        %v1288 = vadd.f32 %v1249, %v1287
        %v1289 = vpop.f32.mrf.mxu0
        %v1290 = vadd.f32 %v1254, %v1289
        %1291 = vdwg.mxu0
        %vm1292 = vcmp.gt.f32.partialorder %v1274, 0.0
        %vm1293 = vcmp.gt.f32.partialorder %v1288, 0.0
        %vm1294 = vcmp.gt.f32.partialorder %v1276, 0.0
        %vm1295 = vcmp.gt.f32.partialorder %v1290, 0.0
        %v1296 = vmul.f32 %v1274, 0.01
        %v1297 = vmul.f32 %v1288, 0.01
        %v1298 = vmul.f32 %v1276, 0.01
        %v1299 = vmul.f32 %v1290, 0.01
        %v1300 = vsel %vm1292, %v1274, %v1296
        %v1301 = vsel %vm1293, %v1288, %v1297
        %v1302 = vsel %vm1294, %v1276, %v1298
        %v1303 = vsel %vm1295, %v1290, %v1299
        %s1304 = scalar_lea.vmem %s364, 32 [#allocation2]
        %1305 = vst [vmem:[%s1304] sm:$0xff] %v1300
        %1306 = vst [vmem:[%s1304 + $0x8] sm:$0xff] %v1301
        %1307 = vst [vmem:[%s1304 + $0x10] sm:$0xff] %v1302
        %1308 = vst [vmem:[%s1304 + $0x18] sm:$0xff] %v1303
        %s1309 = scalar_lea.vmem %s370, 128
        %v1310 = vld [vmem:[%s1309] sm:$0xff]
        %v1311 = vld [vmem:[%s1309 + $0x8] sm:$0xff]
        %v1312 = vld [vmem:[%s1309 + $0x10] sm:$0xff]
        %v1313 = vld [vmem:[%s1309 + $0x18] sm:$0xff]
        %v1314 = vld [vmem:[%s1309 + $0x20] sm:$0xff]
        %v1315 = vld [vmem:[%s1309 + $0x28] sm:$0xff]
        %v1316 = vld [vmem:[%s1309 + $0x30] sm:$0xff]
        %v1317 = vld [vmem:[%s1309 + $0x38] sm:$0xff]
        %s1318 = scalar_lea.vmem %s377, 160
        %v1319 = vld [vmem:[%s1318] sm:$0xff]
        %v1320 = vld [vmem:[%s1318 + $0x8] sm:$0xff]
        %v1321 = vld [vmem:[%s1318 + $0x10] sm:$0xff]
        %v1322 = vld [vmem:[%s1318 + $0x18] sm:$0xff]
        %v1323 = vld [vmem:[%s1318 + $0x20] sm:$0xff]
        %v1324 = vld [vmem:[%s1318 + $0x28] sm:$0xff]
        %v1325 = vld [vmem:[%s1318 + $0x30] sm:$0xff]
        %v1326 = vld [vmem:[%s1318 + $0x38] sm:$0xff]
        %v1327 = vld [vmem:[%s1318 + $0x40] sm:$0xff]
        %v1328 = vld [vmem:[%s1318 + $0x48] sm:$0x11]
        %s1329 = scalar_lea.vmem %s384, 16
        %v1330 = vld [vmem:[%s1329] sm:$0x77]
        %v1331 = vxor.u32 %v1330, 2147483648
        %v1332 = vmul.f32 %v1331, 1.442695
        %v1333 = vpow.pop %v1332
        %v1334 = vadd.f32 %v1333, 1.0
        %v1335 = vrcp.pop %v1334
        %v1336 = vmul.f32 %v1334, %v1335
        %v1337 = vsub.f32 1.0, %v1336
        %v1338 = vmul.f32 %v1335, %v1337
        %v1339 = vadd.f32 %v1335, %v1338
        %vm1340 = vweird.f32 %v1334
        %vm1341 = vweird.f32 %v1335
        %vm1342 = vmor %vm1340, %vm1341
        %v1343 = vsel %vm1342, %v1335, %v1339
        %v1344 = vand.u32 2147483647, %v1334
        %vm1345 = vcmp.eq.f32.partialorder %v1344, 8.507059e+37
        %v1346 = vand.u32 %v1334, 2147483648
        %v1347 = vor.u32 1.1754944e-38, %v1346
        %v1348 = vsel %vm1345, %v1347, %v1343
        %v1349 = vmul.f32 1.0, %v1348
        %1351 = vst [vmem:[#allocation1] ss:$2 sm:$0xff] %v1349
        %v1352 = vld.sshfl [vmem:[#allocation1] sm:$0xff pattern:$0x75316420]
        %v1353 = vld.sshfl [vmem:[#allocation1 + $0x8] sm:$0xff pattern:$0x75316420]
        %v1356 = vpack.c.bf16 %v1352, %v1352
        %v1357 = vpack.c.bf16 %v1353, %v1353
        %v1358 = vld [vmem:[%s3] sm:$0xf]
        %v1359 = vld [vmem:[%s3 + $0x4] sm:$0xf]
        %v1360 = vld [vmem:[%s3 + $0x8] sm:$0xf]
        %v1361 = vld [vmem:[%s3 + $0xc] sm:$0xf]
        %v1362 = vld [vmem:[%s4] sm:$0xf]
        %v1363 = vld [vmem:[%s4 + $0x4] sm:$0xf]
        %v1364 = vld [vmem:[%s4 + $0x8] sm:$0xf]
        %v1365 = vld [vmem:[%s4 + $0xc] sm:$0xf]
        %v1370 = vunpack.c.l.b16 %v1362
        %v1371 = vunpack.c.l.b16 %v1363
        %v1372 = vunpack.c.l.b16 %v1364
        %v1373 = vunpack.c.l.b16 %v1365
        %v1374 = vpack.c.b16 %v1371, %v1370
        %v1375 = vpack.c.b16 %v1373, %v1372
        %v1386 = vunpack.c.l.b16 %v1319
        %v1387 = vunpack.c.h.b16 %v1319
        %v1388 = vunpack.c.l.b16 %v1320
        %v1389 = vunpack.c.h.b16 %v1320
        %v1390 = vunpack.c.l.b16 %v1321
        %v1391 = vunpack.c.h.b16 %v1321
        %v1392 = vunpack.c.l.b16 %v1322
        %v1393 = vunpack.c.h.b16 %v1322
        %v1394 = vunpack.c.l.b16 %v1323
        %v1395 = vunpack.c.h.b16 %v1323
        %v1396 = vunpack.c.l.b16 %v1324
        %v1397 = vunpack.c.h.b16 %v1324
        %v1398 = vunpack.c.l.b16 %v1325
        %v1399 = vunpack.c.h.b16 %v1325
        %v1400 = vunpack.c.l.b16 %v1326
        %v1401 = vunpack.c.h.b16 %v1326
        %v1402 = vunpack.c.l.b16 %v1327
        %v1403 = vunpack.c.h.b16 %v1327
        %v1404 = vunpack.c.l.b16 %v1328
        %v1405 = vunpack.c.h.b16 %v1328
        %v1406 = vpack.c.b16 %v1388, %v1386
        %v1407 = vpack.c.b16 %v1389, %v1387
        %v1408 = vpack.c.b16 %v1392, %v1390
        %v1409 = vpack.c.b16 %v1393, %v1391
        %v1410 = vpack.c.b16 %v1396, %v1394
        %v1411 = vpack.c.b16 %v1397, %v1395
        %v1412 = vpack.c.b16 %v1400, %v1398
        %v1413 = vpack.c.b16 %v1401, %v1399
        %v1414 = vpack.c.b16 %v1404, %v1402
        %v1415 = vpack.c.b16 %v1405, %v1403
        %v1425 = vsel %vm500, %v1374, 0
        %v1428 = vsel %vm500, %v1375, 0
        %v1431 = vsel %vm507, %v1414, 0
        %v1434 = vsel %vm507, %v1415, 0
        %1436 = vmatpush.bf16.msra.mxu0 0
        %1437 = vmatpush.bf16.msra.mxu0 0
        %1438 = vmatpush.bf16.msra.mxu0 0
        %1439 = vmatpush.bf16.msra.mxu0 %v1431
        %1440 = vmatpush.bf16.msra.mxu0 %v1412
        %1441 = vmatpush.bf16.msra.mxu0 %v1410
        %1442 = vmatpush.bf16.msra.mxu0 %v1408
        %1443 = vmatpush.bf16.msra.mxu0 %v1406
        %1444 = vmatmul.bf16.gmra.mxu0 %v1425
        %v1445 = vpop.f32.mrf.mxu0
        %v1446 = vadd.f32 0.0, %v1445
        %v1447 = vpop.f32.mrf.mxu0
        %v1448 = vadd.f32 0.0, %v1447
        %1449 = vmatmul.bf16.gmra.mxu0 %v1428
        %v1450 = vpop.f32.mrf.mxu0
        %v1451 = vadd.f32 0.0, %v1450
        %v1452 = vpop.f32.mrf.mxu0
        %v1453 = vadd.f32 0.0, %v1452
        %1454 = vdwg.mxu0
        %1455 = vmatpush.bf16.msra.mxu0 0
        %1456 = vmatpush.bf16.msra.mxu0 0
        %1457 = vmatpush.bf16.msra.mxu0 0
        %1458 = vmatpush.bf16.msra.mxu0 %v1434
        %1459 = vmatpush.bf16.msra.mxu0 %v1413
        %1460 = vmatpush.bf16.msra.mxu0 %v1411
        %1461 = vmatpush.bf16.msra.mxu0 %v1409
        %1462 = vmatpush.bf16.msra.mxu0 %v1407
        %1463 = vmatmul.bf16.gmra.mxu0 %v1425
        %v1464 = vpop.f32.mrf.mxu0
        %v1465 = vadd.f32 0.0, %v1464
        %v1466 = vpop.f32.mrf.mxu0
        %v1467 = vadd.f32 0.0, %v1466
        %1468 = vmatmul.bf16.gmra.mxu0 %v1428
        %v1469 = vpop.f32.mrf.mxu0
        %v1470 = vadd.f32 0.0, %v1469
        %v1471 = vpop.f32.mrf.mxu0
        %v1472 = vadd.f32 0.0, %v1471
        %1473 = vdwg.mxu0
        %v1478 = vunpack.c.l.b16 %v1358
        %v1479 = vunpack.c.l.b16 %v1359
        %v1480 = vunpack.c.l.b16 %v1360
        %v1481 = vunpack.c.l.b16 %v1361
        %v1482 = vpack.c.b16 %v1479, %v1478
        %v1483 = vpack.c.b16 %v1481, %v1480
        %v1492 = vunpack.c.l.b16 %v1310
        %v1493 = vunpack.c.h.b16 %v1310
        %v1494 = vunpack.c.l.b16 %v1311
        %v1495 = vunpack.c.h.b16 %v1311
        %v1496 = vunpack.c.l.b16 %v1312
        %v1497 = vunpack.c.h.b16 %v1312
        %v1498 = vunpack.c.l.b16 %v1313
        %v1499 = vunpack.c.h.b16 %v1313
        %v1500 = vunpack.c.l.b16 %v1314
        %v1501 = vunpack.c.h.b16 %v1314
        %v1502 = vunpack.c.l.b16 %v1315
        %v1503 = vunpack.c.h.b16 %v1315
        %v1504 = vunpack.c.l.b16 %v1316
        %v1505 = vunpack.c.h.b16 %v1316
        %v1506 = vunpack.c.l.b16 %v1317
        %v1507 = vunpack.c.h.b16 %v1317
        %v1508 = vpack.c.b16 %v1494, %v1492
        %v1509 = vpack.c.b16 %v1495, %v1493
        %v1510 = vpack.c.b16 %v1498, %v1496
        %v1511 = vpack.c.b16 %v1499, %v1497
        %v1512 = vpack.c.b16 %v1502, %v1500
        %v1513 = vpack.c.b16 %v1503, %v1501
        %v1514 = vpack.c.b16 %v1506, %v1504
        %v1515 = vpack.c.b16 %v1507, %v1505
        %v1525 = vsel %vm602, %v1482, 0
        %v1528 = vsel %vm602, %v1483, 0
        %1530 = vmatpush.bf16.msra.mxu0 0
        %1531 = vmatpush.bf16.msra.mxu0 0
        %1532 = vmatpush.bf16.msra.mxu0 0
        %1533 = vmatpush.bf16.msra.mxu0 0
        %1534 = vmatpush.bf16.msra.mxu0 %v1514
        %1535 = vmatpush.bf16.msra.mxu0 %v1512
        %1536 = vmatpush.bf16.msra.mxu0 %v1510
        %1537 = vmatpush.bf16.msra.mxu0 %v1508
        %1538 = vmatmul.bf16.gmra.mxu0 %v1525
        %v1539 = vpop.f32.mrf.mxu0
        %v1540 = vadd.f32 %v1446, %v1539
        %v1541 = vpop.f32.mrf.mxu0
        %v1542 = vadd.f32 %v1448, %v1541
        %1543 = vmatmul.bf16.gmra.mxu0 %v1528
        %v1544 = vpop.f32.mrf.mxu0
        %v1545 = vadd.f32 %v1451, %v1544
        %v1546 = vpop.f32.mrf.mxu0
        %v1547 = vadd.f32 %v1453, %v1546
        %1548 = vdwg.mxu0
        %1549 = vmatpush.bf16.msra.mxu0 0
        %1550 = vmatpush.bf16.msra.mxu0 0
        %1551 = vmatpush.bf16.msra.mxu0 0
        %1552 = vmatpush.bf16.msra.mxu0 0
        %1553 = vmatpush.bf16.msra.mxu0 %v1515
        %1554 = vmatpush.bf16.msra.mxu0 %v1513
        %1555 = vmatpush.bf16.msra.mxu0 %v1511
        %1556 = vmatpush.bf16.msra.mxu0 %v1509
        %1557 = vmatmul.bf16.gmra.mxu0 %v1525
        %v1558 = vpop.f32.mrf.mxu0
        %v1559 = vadd.f32 %v1465, %v1558
        %v1560 = vpop.f32.mrf.mxu0
        %v1561 = vadd.f32 %v1467, %v1560
        %1562 = vmatmul.bf16.gmra.mxu0 %v1528
        %v1563 = vpop.f32.mrf.mxu0
        %v1564 = vadd.f32 %v1470, %v1563
        %v1565 = vpop.f32.mrf.mxu0
        %v1566 = vadd.f32 %v1472, %v1565
        %1567 = vdwg.mxu0
        %v1568 = vld [vmem:[%s5] sm:$0xf]
        %v1569 = vld [vmem:[%s5 + $0x4] sm:$0xf]
        %v1570 = vld [vmem:[%s5 + $0x8] sm:$0xf]
        %v1571 = vld [vmem:[%s5 + $0xc] sm:$0xf]
        %v1576 = vunpack.c.l.b16 %v1568
        %v1577 = vunpack.c.l.b16 %v1569
        %v1578 = vunpack.c.l.b16 %v1570
        %v1579 = vunpack.c.l.b16 %v1571
        %v1580 = vpack.c.b16 %v1577, %v1576
        %v1581 = vpack.c.b16 %v1579, %v1578
        %v1583 = vsel %vm661, %v1580, 0
        %v1586 = vsel %vm661, %v1581, 0
        %v1589 = vand.u32 %v1356, %v671
        %v1592 = vand.u32 %v1357, %v671
        %1594 = vmatpush.bf16.msra.mxu0 0
        %1595 = vmatpush.bf16.msra.mxu0 0
        %1596 = vmatpush.bf16.msra.mxu0 0
        %1597 = vmatpush.bf16.msra.mxu0 0
        %1598 = vmatpush.bf16.msra.mxu0 0
        %1599 = vmatpush.bf16.msra.mxu0 0
        %1600 = vmatpush.bf16.msra.mxu0 0
        %1601 = vmatpush.bf16.msra.mxu0 %v1589
        %1602 = vmatmul.bf16.gmra.mxu0 %v1583
        %v1603 = vpop.f32.mrf.mxu0
        %v1604 = vadd.f32 0.0, %v1603
        %v1605 = vpop.f32.mrf.mxu0
        %v1606 = vadd.f32 0.0, %v1605
        %1607 = vmatmul.bf16.gmra.mxu0 %v1586
        %v1608 = vpop.f32.mrf.mxu0
        %v1609 = vadd.f32 0.0, %v1608
        %v1610 = vpop.f32.mrf.mxu0
        %v1611 = vadd.f32 0.0, %v1610
        %1612 = vdwg.mxu0
        %1613 = vmatpush.bf16.msra.mxu0 0
        %1614 = vmatpush.bf16.msra.mxu0 0
        %1615 = vmatpush.bf16.msra.mxu0 0
        %1616 = vmatpush.bf16.msra.mxu0 0
        %1617 = vmatpush.bf16.msra.mxu0 0
        %1618 = vmatpush.bf16.msra.mxu0 0
        %1619 = vmatpush.bf16.msra.mxu0 0
        %1620 = vmatpush.bf16.msra.mxu0 %v1592
        %1621 = vmatmul.bf16.gmra.mxu0 %v1583
        %v1622 = vpop.f32.mrf.mxu0
        %v1623 = vadd.f32 0.0, %v1622
        %v1624 = vpop.f32.mrf.mxu0
        %v1625 = vadd.f32 0.0, %v1624
        %1626 = vmatmul.bf16.gmra.mxu0 %v1586
        %v1627 = vpop.f32.mrf.mxu0
        %v1628 = vadd.f32 0.0, %v1627
        %v1629 = vpop.f32.mrf.mxu0
        %v1630 = vadd.f32 0.0, %v1629
        %1631 = vdwg.mxu0
        %v1632 = vadd.f32 %v1540, %v1604
        %v1633 = vadd.f32 %v1559, %v1623
        %v1634 = vadd.f32 %v1542, %v1606
        %v1635 = vadd.f32 %v1561, %v1625
        %v1636 = vadd.f32 %v1545, %v1609
        %v1637 = vadd.f32 %v1564, %v1628
        %v1638 = vadd.f32 %v1547, %v1611
        %v1639 = vadd.f32 %v1566, %v1630
        %v1640 = vld [vmem:[%s6] sm:$0xff]
        %v1641 = vld [vmem:[%s6 + $0x8] sm:$0xff]
        %v1642 = vld [vmem:[%s6 + $0x10] sm:$0xff]
        %v1643 = vld [vmem:[%s6 + $0x18] sm:$0xff]
        %1645 = vset.pattern.permute.xlu0 0
        %1646 = vperm.xlu0 %1645, %v1640
        %v1647 = vpop.permute.xlu0 %1646
        %1650 = vset.pattern.permute.xlu0 0
        %1651 = vperm.xlu0 %1650, %v1641
        %v1652 = vpop.permute.xlu0 %1651
        %1655 = vset.pattern.permute.xlu0 0
        %1656 = vperm.xlu0 %1655, %v1642
        %v1657 = vpop.permute.xlu0 %1656
        %1660 = vset.pattern.permute.xlu0 0
        %1661 = vperm.xlu0 %1660, %v1643
        %v1662 = vpop.permute.xlu0 %1661
        %v1664 = vadd.f32 %v1632, %v1647
        %v1665 = vadd.f32 %v1633, %v1647
        %v1666 = vadd.f32 %v1634, %v1652
        %v1667 = vadd.f32 %v1635, %v1652
        %v1668 = vadd.f32 %v1636, %v1657
        %v1669 = vadd.f32 %v1637, %v1657
        %v1670 = vadd.f32 %v1638, %v1662
        %v1671 = vadd.f32 %v1639, %v1662
        %vm1672 = vcmp.gt.f32.partialorder %v1664, 0.0
        %vm1673 = vcmp.gt.f32.partialorder %v1665, 0.0
        %vm1674 = vcmp.gt.f32.partialorder %v1666, 0.0
        %vm1675 = vcmp.gt.f32.partialorder %v1667, 0.0
        %vm1676 = vcmp.gt.f32.partialorder %v1668, 0.0
        %vm1677 = vcmp.gt.f32.partialorder %v1669, 0.0
        %vm1678 = vcmp.gt.f32.partialorder %v1670, 0.0
        %vm1679 = vcmp.gt.f32.partialorder %v1671, 0.0
        %v1680 = vmul.f32 %v1664, 0.01
        %v1681 = vmul.f32 %v1665, 0.01
        %v1682 = vmul.f32 %v1666, 0.01
        %v1683 = vmul.f32 %v1667, 0.01
        %v1684 = vmul.f32 %v1668, 0.01
        %v1685 = vmul.f32 %v1669, 0.01
        %v1686 = vmul.f32 %v1670, 0.01
        %v1687 = vmul.f32 %v1671, 0.01
        %v1688 = vsel %vm1672, %v1664, %v1680
        %v1689 = vsel %vm1673, %v1665, %v1681
        %v1690 = vsel %vm1674, %v1666, %v1682
        %v1691 = vsel %vm1675, %v1667, %v1683
        %v1692 = vsel %vm1676, %v1668, %v1684
        %v1693 = vsel %vm1677, %v1669, %v1685
        %v1694 = vsel %vm1678, %v1670, %v1686
        %v1695 = vsel %vm1679, %v1671, %v1687
        %v1696 = vld [vmem:[%s7] sm:$0xf]
        %v1697 = vld [vmem:[%s7 + $0x4] sm:$0xf]
        %v1698 = vpack.c.bf16 %v1690, %v1688
        %v1699 = vpack.c.bf16 %v1691, %v1689
        %v1700 = vpack.c.bf16 %v1694, %v1692
        %v1701 = vpack.c.bf16 %v1695, %v1693
        %v1702 = vld [vmem:[%s8] sm:$0xff]
        %v1703 = vld [vmem:[%s8 + $0x8] sm:$0xff]
        %1705 = vset.pattern.permute.xlu0 0
        %1706 = vperm.xlu0 %1705, %v1702
        %v1707 = vpop.permute.xlu0 %1706
        %1710 = vset.pattern.permute.xlu0 0
        %1711 = vperm.xlu0 %1710, %v1703
        %v1712 = vpop.permute.xlu0 %1711
        %v1716 = vunpack.c.l.b16 %v1696
        %v1717 = vunpack.c.l.b16 %v1697
        %v1718 = vpack.c.b16 %v1717, %v1716
        %v1720 = vsel %vm803, %v1718, 0
        %1722 = vmatpush.bf16.msra.mxu0 0
        %1723 = vmatpush.bf16.msra.mxu0 0
        %1724 = vmatpush.bf16.msra.mxu0 0
        %1725 = vmatpush.bf16.msra.mxu0 0
        %1726 = vmatpush.bf16.msra.mxu0 0
        %1727 = vmatpush.bf16.msra.mxu0 0
        %1728 = vmatpush.bf16.msra.mxu0 %v1700
        %1729 = vmatpush.bf16.msra.mxu0 %v1698
        %1730 = vmatmul.bf16.gmra.mxu0 %v1720
        %v1731 = vpop.f32.mrf.mxu0
        %v1732 = vadd.f32 %v1707, %v1731
        %v1733 = vpop.f32.mrf.mxu0
        %v1734 = vadd.f32 %v1712, %v1733
        %1735 = vdwg.mxu0
        %1736 = vmatpush.bf16.msra.mxu0 0
        %1737 = vmatpush.bf16.msra.mxu0 0
        %1738 = vmatpush.bf16.msra.mxu0 0
        %1739 = vmatpush.bf16.msra.mxu0 0
        %1740 = vmatpush.bf16.msra.mxu0 0
        %1741 = vmatpush.bf16.msra.mxu0 0
        %1742 = vmatpush.bf16.msra.mxu0 %v1701
        %1743 = vmatpush.bf16.msra.mxu0 %v1699
        %1744 = vmatmul.bf16.gmra.mxu0 %v1720
        %v1745 = vpop.f32.mrf.mxu0
        %v1746 = vadd.f32 %v1707, %v1745
        %v1747 = vpop.f32.mrf.mxu0
        %v1748 = vadd.f32 %v1712, %v1747
        %1749 = vdwg.mxu0
        %vm1750 = vcmp.gt.f32.partialorder %v1732, 0.0
        %vm1751 = vcmp.gt.f32.partialorder %v1746, 0.0
        %vm1752 = vcmp.gt.f32.partialorder %v1734, 0.0
        %vm1753 = vcmp.gt.f32.partialorder %v1748, 0.0
        %v1754 = vmul.f32 %v1732, 0.01
        %v1755 = vmul.f32 %v1746, 0.01
        %v1756 = vmul.f32 %v1734, 0.01
        %v1757 = vmul.f32 %v1748, 0.01
        %v1758 = vsel %vm1750, %v1732, %v1754
        %v1759 = vsel %vm1751, %v1746, %v1755
        %v1760 = vsel %vm1752, %v1734, %v1756
        %v1761 = vsel %vm1753, %v1748, %v1757
        %s1762 = scalar_lea.vmem %s364, 64 [#allocation2]
        %1763 = vst [vmem:[%s1762] sm:$0xff] %v1758
        %1764 = vst [vmem:[%s1762 + $0x8] sm:$0xff] %v1759
        %1765 = vst [vmem:[%s1762 + $0x10] sm:$0xff] %v1760
        %1766 = vst [vmem:[%s1762 + $0x18] sm:$0xff] %v1761
        %s1767 = scalar_lea.vmem %s370, 192
        %v1768 = vld [vmem:[%s1767] sm:$0xff]
        %v1769 = vld [vmem:[%s1767 + $0x8] sm:$0xff]
        %v1770 = vld [vmem:[%s1767 + $0x10] sm:$0xff]
        %v1771 = vld [vmem:[%s1767 + $0x18] sm:$0xff]
        %v1772 = vld [vmem:[%s1767 + $0x20] sm:$0xff]
        %v1773 = vld [vmem:[%s1767 + $0x28] sm:$0xff]
        %v1774 = vld [vmem:[%s1767 + $0x30] sm:$0xff]
        %v1775 = vld [vmem:[%s1767 + $0x38] sm:$0xff]
        %s1776 = scalar_lea.vmem %s377, 240
        %v1777 = vld [vmem:[%s1776] sm:$0xff]
        %v1778 = vld [vmem:[%s1776 + $0x8] sm:$0xff]
        %v1779 = vld [vmem:[%s1776 + $0x10] sm:$0xff]
        %v1780 = vld [vmem:[%s1776 + $0x18] sm:$0xff]
        %v1781 = vld [vmem:[%s1776 + $0x20] sm:$0xff]
        %v1782 = vld [vmem:[%s1776 + $0x28] sm:$0xff]
        %v1783 = vld [vmem:[%s1776 + $0x30] sm:$0xff]
        %v1784 = vld [vmem:[%s1776 + $0x38] sm:$0xff]
        %v1785 = vld [vmem:[%s1776 + $0x40] sm:$0xff]
        %v1786 = vld [vmem:[%s1776 + $0x48] sm:$0x11]
        %s1787 = scalar_lea.vmem %s384, 24
        %v1788 = vld [vmem:[%s1787] sm:$0x77]
        %v1789 = vxor.u32 %v1788, 2147483648
        %v1790 = vmul.f32 %v1789, 1.442695
        %v1791 = vpow.pop %v1790
        %v1792 = vadd.f32 %v1791, 1.0
        %v1793 = vrcp.pop %v1792
        %v1794 = vmul.f32 %v1792, %v1793
        %v1795 = vsub.f32 1.0, %v1794
        %v1796 = vmul.f32 %v1793, %v1795
        %v1797 = vadd.f32 %v1793, %v1796
        %vm1798 = vweird.f32 %v1792
        %vm1799 = vweird.f32 %v1793
        %vm1800 = vmor %vm1798, %vm1799
        %v1801 = vsel %vm1800, %v1793, %v1797
        %v1802 = vand.u32 2147483647, %v1792
        %vm1803 = vcmp.eq.f32.partialorder %v1802, 8.507059e+37
        %v1804 = vand.u32 %v1792, 2147483648
        %v1805 = vor.u32 1.1754944e-38, %v1804
        %v1806 = vsel %vm1803, %v1805, %v1801
        %v1807 = vmul.f32 1.0, %v1806
        %1809 = vst [vmem:[#allocation1] ss:$2 sm:$0xff] %v1807
        %v1810 = vld.sshfl [vmem:[#allocation1] sm:$0xff pattern:$0x75316420]
        %v1811 = vld.sshfl [vmem:[#allocation1 + $0x8] sm:$0xff pattern:$0x75316420]
        %v1814 = vpack.c.bf16 %v1810, %v1810
        %v1815 = vpack.c.bf16 %v1811, %v1811
        %v1816 = vld [vmem:[%s3] sm:$0xf]
        %v1817 = vld [vmem:[%s3 + $0x4] sm:$0xf]
        %v1818 = vld [vmem:[%s3 + $0x8] sm:$0xf]
        %v1819 = vld [vmem:[%s3 + $0xc] sm:$0xf]
        %v1820 = vld [vmem:[%s4] sm:$0xf]
        %v1821 = vld [vmem:[%s4 + $0x4] sm:$0xf]
        %v1822 = vld [vmem:[%s4 + $0x8] sm:$0xf]
        %v1823 = vld [vmem:[%s4 + $0xc] sm:$0xf]
        %v1828 = vunpack.c.l.b16 %v1820
        %v1829 = vunpack.c.l.b16 %v1821
        %v1830 = vunpack.c.l.b16 %v1822
        %v1831 = vunpack.c.l.b16 %v1823
        %v1832 = vpack.c.b16 %v1829, %v1828
        %v1833 = vpack.c.b16 %v1831, %v1830
        %v1844 = vunpack.c.l.b16 %v1777
        %v1845 = vunpack.c.h.b16 %v1777
        %v1846 = vunpack.c.l.b16 %v1778
        %v1847 = vunpack.c.h.b16 %v1778
        %v1848 = vunpack.c.l.b16 %v1779
        %v1849 = vunpack.c.h.b16 %v1779
        %v1850 = vunpack.c.l.b16 %v1780
        %v1851 = vunpack.c.h.b16 %v1780
        %v1852 = vunpack.c.l.b16 %v1781
        %v1853 = vunpack.c.h.b16 %v1781
        %v1854 = vunpack.c.l.b16 %v1782
        %v1855 = vunpack.c.h.b16 %v1782
        %v1856 = vunpack.c.l.b16 %v1783
        %v1857 = vunpack.c.h.b16 %v1783
        %v1858 = vunpack.c.l.b16 %v1784
        %v1859 = vunpack.c.h.b16 %v1784
        %v1860 = vunpack.c.l.b16 %v1785
        %v1861 = vunpack.c.h.b16 %v1785
        %v1862 = vunpack.c.l.b16 %v1786
        %v1863 = vunpack.c.h.b16 %v1786
        %v1864 = vpack.c.b16 %v1846, %v1844
        %v1865 = vpack.c.b16 %v1847, %v1845
        %v1866 = vpack.c.b16 %v1850, %v1848
        %v1867 = vpack.c.b16 %v1851, %v1849
        %v1868 = vpack.c.b16 %v1854, %v1852
        %v1869 = vpack.c.b16 %v1855, %v1853
        %v1870 = vpack.c.b16 %v1858, %v1856
        %v1871 = vpack.c.b16 %v1859, %v1857
        %v1872 = vpack.c.b16 %v1862, %v1860
        %v1873 = vpack.c.b16 %v1863, %v1861
        %v1883 = vsel %vm500, %v1832, 0
        %v1886 = vsel %vm500, %v1833, 0
        %v1889 = vsel %vm507, %v1872, 0
        %v1892 = vsel %vm507, %v1873, 0
        %1894 = vmatpush.bf16.msra.mxu0 0
        %1895 = vmatpush.bf16.msra.mxu0 0
        %1896 = vmatpush.bf16.msra.mxu0 0
        %1897 = vmatpush.bf16.msra.mxu0 %v1889
        %1898 = vmatpush.bf16.msra.mxu0 %v1870
        %1899 = vmatpush.bf16.msra.mxu0 %v1868
        %1900 = vmatpush.bf16.msra.mxu0 %v1866
        %1901 = vmatpush.bf16.msra.mxu0 %v1864
        %1902 = vmatmul.bf16.gmra.mxu0 %v1883
        %v1903 = vpop.f32.mrf.mxu0
        %v1904 = vadd.f32 0.0, %v1903
        %v1905 = vpop.f32.mrf.mxu0
        %v1906 = vadd.f32 0.0, %v1905
        %1907 = vmatmul.bf16.gmra.mxu0 %v1886
        %v1908 = vpop.f32.mrf.mxu0
        %v1909 = vadd.f32 0.0, %v1908
        %v1910 = vpop.f32.mrf.mxu0
        %v1911 = vadd.f32 0.0, %v1910
        %1912 = vdwg.mxu0
        %1913 = vmatpush.bf16.msra.mxu0 0
        %1914 = vmatpush.bf16.msra.mxu0 0
        %1915 = vmatpush.bf16.msra.mxu0 0
        %1916 = vmatpush.bf16.msra.mxu0 %v1892
        %1917 = vmatpush.bf16.msra.mxu0 %v1871
        %1918 = vmatpush.bf16.msra.mxu0 %v1869
        %1919 = vmatpush.bf16.msra.mxu0 %v1867
        %1920 = vmatpush.bf16.msra.mxu0 %v1865
        %1921 = vmatmul.bf16.gmra.mxu0 %v1883
        %v1922 = vpop.f32.mrf.mxu0
        %v1923 = vadd.f32 0.0, %v1922
        %v1924 = vpop.f32.mrf.mxu0
        %v1925 = vadd.f32 0.0, %v1924
        %1926 = vmatmul.bf16.gmra.mxu0 %v1886
        %v1927 = vpop.f32.mrf.mxu0
        %v1928 = vadd.f32 0.0, %v1927
        %v1929 = vpop.f32.mrf.mxu0
        %v1930 = vadd.f32 0.0, %v1929
        %1931 = vdwg.mxu0
        %v1936 = vunpack.c.l.b16 %v1816
        %v1937 = vunpack.c.l.b16 %v1817
        %v1938 = vunpack.c.l.b16 %v1818
        %v1939 = vunpack.c.l.b16 %v1819
        %v1940 = vpack.c.b16 %v1937, %v1936
        %v1941 = vpack.c.b16 %v1939, %v1938
        %v1950 = vunpack.c.l.b16 %v1768
        %v1951 = vunpack.c.h.b16 %v1768
        %v1952 = vunpack.c.l.b16 %v1769
        %v1953 = vunpack.c.h.b16 %v1769
        %v1954 = vunpack.c.l.b16 %v1770
        %v1955 = vunpack.c.h.b16 %v1770
        %v1956 = vunpack.c.l.b16 %v1771
        %v1957 = vunpack.c.h.b16 %v1771
        %v1958 = vunpack.c.l.b16 %v1772
        %v1959 = vunpack.c.h.b16 %v1772
        %v1960 = vunpack.c.l.b16 %v1773
        %v1961 = vunpack.c.h.b16 %v1773
        %v1962 = vunpack.c.l.b16 %v1774
        %v1963 = vunpack.c.h.b16 %v1774
        %v1964 = vunpack.c.l.b16 %v1775
        %v1965 = vunpack.c.h.b16 %v1775
        %v1966 = vpack.c.b16 %v1952, %v1950
        %v1967 = vpack.c.b16 %v1953, %v1951
        %v1968 = vpack.c.b16 %v1956, %v1954
        %v1969 = vpack.c.b16 %v1957, %v1955
        %v1970 = vpack.c.b16 %v1960, %v1958
        %v1971 = vpack.c.b16 %v1961, %v1959
        %v1972 = vpack.c.b16 %v1964, %v1962
        %v1973 = vpack.c.b16 %v1965, %v1963
        %v1983 = vsel %vm602, %v1940, 0
        %v1986 = vsel %vm602, %v1941, 0
        %1988 = vmatpush.bf16.msra.mxu0 0
        %1989 = vmatpush.bf16.msra.mxu0 0
        %1990 = vmatpush.bf16.msra.mxu0 0
        %1991 = vmatpush.bf16.msra.mxu0 0
        %1992 = vmatpush.bf16.msra.mxu0 %v1972
        %1993 = vmatpush.bf16.msra.mxu0 %v1970
        %1994 = vmatpush.bf16.msra.mxu0 %v1968
        %1995 = vmatpush.bf16.msra.mxu0 %v1966
        %1996 = vmatmul.bf16.gmra.mxu0 %v1983
        %v1997 = vpop.f32.mrf.mxu0
        %v1998 = vadd.f32 %v1904, %v1997
        %v1999 = vpop.f32.mrf.mxu0
        %v2000 = vadd.f32 %v1906, %v1999
        %2001 = vmatmul.bf16.gmra.mxu0 %v1986
        %v2002 = vpop.f32.mrf.mxu0
        %v2003 = vadd.f32 %v1909, %v2002
        %v2004 = vpop.f32.mrf.mxu0
        %v2005 = vadd.f32 %v1911, %v2004
        %2006 = vdwg.mxu0
        %2007 = vmatpush.bf16.msra.mxu0 0
        %2008 = vmatpush.bf16.msra.mxu0 0
        %2009 = vmatpush.bf16.msra.mxu0 0
        %2010 = vmatpush.bf16.msra.mxu0 0
        %2011 = vmatpush.bf16.msra.mxu0 %v1973
        %2012 = vmatpush.bf16.msra.mxu0 %v1971
        %2013 = vmatpush.bf16.msra.mxu0 %v1969
        %2014 = vmatpush.bf16.msra.mxu0 %v1967
        %2015 = vmatmul.bf16.gmra.mxu0 %v1983
        %v2016 = vpop.f32.mrf.mxu0
        %v2017 = vadd.f32 %v1923, %v2016
        %v2018 = vpop.f32.mrf.mxu0
        %v2019 = vadd.f32 %v1925, %v2018
        %2020 = vmatmul.bf16.gmra.mxu0 %v1986
        %v2021 = vpop.f32.mrf.mxu0
        %v2022 = vadd.f32 %v1928, %v2021
        %v2023 = vpop.f32.mrf.mxu0
        %v2024 = vadd.f32 %v1930, %v2023
        %2025 = vdwg.mxu0
        %v2026 = vld [vmem:[%s5] sm:$0xf]
        %v2027 = vld [vmem:[%s5 + $0x4] sm:$0xf]
        %v2028 = vld [vmem:[%s5 + $0x8] sm:$0xf]
        %v2029 = vld [vmem:[%s5 + $0xc] sm:$0xf]
        %v2034 = vunpack.c.l.b16 %v2026
        %v2035 = vunpack.c.l.b16 %v2027
        %v2036 = vunpack.c.l.b16 %v2028
        %v2037 = vunpack.c.l.b16 %v2029
        %v2038 = vpack.c.b16 %v2035, %v2034
        %v2039 = vpack.c.b16 %v2037, %v2036
        %v2041 = vsel %vm661, %v2038, 0
        %v2044 = vsel %vm661, %v2039, 0
        %v2047 = vand.u32 %v1814, %v671
        %v2050 = vand.u32 %v1815, %v671
        %2052 = vmatpush.bf16.msra.mxu0 0
        %2053 = vmatpush.bf16.msra.mxu0 0
        %2054 = vmatpush.bf16.msra.mxu0 0
        %2055 = vmatpush.bf16.msra.mxu0 0
        %2056 = vmatpush.bf16.msra.mxu0 0
        %2057 = vmatpush.bf16.msra.mxu0 0
        %2058 = vmatpush.bf16.msra.mxu0 0
        %2059 = vmatpush.bf16.msra.mxu0 %v2047
        %2060 = vmatmul.bf16.gmra.mxu0 %v2041
        %v2061 = vpop.f32.mrf.mxu0
        %v2062 = vadd.f32 0.0, %v2061
        %v2063 = vpop.f32.mrf.mxu0
        %v2064 = vadd.f32 0.0, %v2063
        %2065 = vmatmul.bf16.gmra.mxu0 %v2044
        %v2066 = vpop.f32.mrf.mxu0
        %v2067 = vadd.f32 0.0, %v2066
        %v2068 = vpop.f32.mrf.mxu0
        %v2069 = vadd.f32 0.0, %v2068
        %2070 = vdwg.mxu0
        %2071 = vmatpush.bf16.msra.mxu0 0
        %2072 = vmatpush.bf16.msra.mxu0 0
        %2073 = vmatpush.bf16.msra.mxu0 0
        %2074 = vmatpush.bf16.msra.mxu0 0
        %2075 = vmatpush.bf16.msra.mxu0 0
        %2076 = vmatpush.bf16.msra.mxu0 0
        %2077 = vmatpush.bf16.msra.mxu0 0
        %2078 = vmatpush.bf16.msra.mxu0 %v2050
        %2079 = vmatmul.bf16.gmra.mxu0 %v2041
        %v2080 = vpop.f32.mrf.mxu0
        %v2081 = vadd.f32 0.0, %v2080
        %v2082 = vpop.f32.mrf.mxu0
        %v2083 = vadd.f32 0.0, %v2082
        %2084 = vmatmul.bf16.gmra.mxu0 %v2044
        %v2085 = vpop.f32.mrf.mxu0
        %v2086 = vadd.f32 0.0, %v2085
        %v2087 = vpop.f32.mrf.mxu0
        %v2088 = vadd.f32 0.0, %v2087
        %2089 = vdwg.mxu0
        %v2090 = vadd.f32 %v1998, %v2062
        %v2091 = vadd.f32 %v2017, %v2081
        %v2092 = vadd.f32 %v2000, %v2064
        %v2093 = vadd.f32 %v2019, %v2083
        %v2094 = vadd.f32 %v2003, %v2067
        %v2095 = vadd.f32 %v2022, %v2086
        %v2096 = vadd.f32 %v2005, %v2069
        %v2097 = vadd.f32 %v2024, %v2088
        %v2098 = vld [vmem:[%s6] sm:$0xff]
        %v2099 = vld [vmem:[%s6 + $0x8] sm:$0xff]
        %v2100 = vld [vmem:[%s6 + $0x10] sm:$0xff]
        %v2101 = vld [vmem:[%s6 + $0x18] sm:$0xff]
        %2103 = vset.pattern.permute.xlu0 0
        %2104 = vperm.xlu0 %2103, %v2098
        %v2105 = vpop.permute.xlu0 %2104
        %2108 = vset.pattern.permute.xlu0 0
        %2109 = vperm.xlu0 %2108, %v2099
        %v2110 = vpop.permute.xlu0 %2109
        %2113 = vset.pattern.permute.xlu0 0
        %2114 = vperm.xlu0 %2113, %v2100
        %v2115 = vpop.permute.xlu0 %2114
        %2118 = vset.pattern.permute.xlu0 0
        %2119 = vperm.xlu0 %2118, %v2101
        %v2120 = vpop.permute.xlu0 %2119
        %v2122 = vadd.f32 %v2090, %v2105
        %v2123 = vadd.f32 %v2091, %v2105
        %v2124 = vadd.f32 %v2092, %v2110
        %v2125 = vadd.f32 %v2093, %v2110
        %v2126 = vadd.f32 %v2094, %v2115
        %v2127 = vadd.f32 %v2095, %v2115
        %v2128 = vadd.f32 %v2096, %v2120
        %v2129 = vadd.f32 %v2097, %v2120
        %vm2130 = vcmp.gt.f32.partialorder %v2122, 0.0
        %vm2131 = vcmp.gt.f32.partialorder %v2123, 0.0
        %vm2132 = vcmp.gt.f32.partialorder %v2124, 0.0
        %vm2133 = vcmp.gt.f32.partialorder %v2125, 0.0
        %vm2134 = vcmp.gt.f32.partialorder %v2126, 0.0
        %vm2135 = vcmp.gt.f32.partialorder %v2127, 0.0
        %vm2136 = vcmp.gt.f32.partialorder %v2128, 0.0
        %vm2137 = vcmp.gt.f32.partialorder %v2129, 0.0
        %v2138 = vmul.f32 %v2122, 0.01
        %v2139 = vmul.f32 %v2123, 0.01
        %v2140 = vmul.f32 %v2124, 0.01
        %v2141 = vmul.f32 %v2125, 0.01
        %v2142 = vmul.f32 %v2126, 0.01
        %v2143 = vmul.f32 %v2127, 0.01
        %v2144 = vmul.f32 %v2128, 0.01
        %v2145 = vmul.f32 %v2129, 0.01
        %v2146 = vsel %vm2130, %v2122, %v2138
        %v2147 = vsel %vm2131, %v2123, %v2139
        %v2148 = vsel %vm2132, %v2124, %v2140
        %v2149 = vsel %vm2133, %v2125, %v2141
        %v2150 = vsel %vm2134, %v2126, %v2142
        %v2151 = vsel %vm2135, %v2127, %v2143
        %v2152 = vsel %vm2136, %v2128, %v2144
        %v2153 = vsel %vm2137, %v2129, %v2145
        %v2154 = vld [vmem:[%s7] sm:$0xf]
        %v2155 = vld [vmem:[%s7 + $0x4] sm:$0xf]
        %v2156 = vpack.c.bf16 %v2148, %v2146
        %v2157 = vpack.c.bf16 %v2149, %v2147
        %v2158 = vpack.c.bf16 %v2152, %v2150
        %v2159 = vpack.c.bf16 %v2153, %v2151
        %v2160 = vld [vmem:[%s8] sm:$0xff]
        %v2161 = vld [vmem:[%s8 + $0x8] sm:$0xff]
        %2163 = vset.pattern.permute.xlu0 0
        %2164 = vperm.xlu0 %2163, %v2160
        %v2165 = vpop.permute.xlu0 %2164
        %2168 = vset.pattern.permute.xlu0 0
        %2169 = vperm.xlu0 %2168, %v2161
        %v2170 = vpop.permute.xlu0 %2169
        %v2174 = vunpack.c.l.b16 %v2154
        %v2175 = vunpack.c.l.b16 %v2155
        %v2176 = vpack.c.b16 %v2175, %v2174
        %v2178 = vsel %vm803, %v2176, 0
        %2180 = vmatpush.bf16.msra.mxu0 0
        %2181 = vmatpush.bf16.msra.mxu0 0
        %2182 = vmatpush.bf16.msra.mxu0 0
        %2183 = vmatpush.bf16.msra.mxu0 0
        %2184 = vmatpush.bf16.msra.mxu0 0
        %2185 = vmatpush.bf16.msra.mxu0 0
        %2186 = vmatpush.bf16.msra.mxu0 %v2158
        %2187 = vmatpush.bf16.msra.mxu0 %v2156
        %2188 = vmatmul.bf16.gmra.mxu0 %v2178
        %v2189 = vpop.f32.mrf.mxu0
        %v2190 = vadd.f32 %v2165, %v2189
        %v2191 = vpop.f32.mrf.mxu0
        %v2192 = vadd.f32 %v2170, %v2191
        %2193 = vdwg.mxu0
        %2194 = vmatpush.bf16.msra.mxu0 0
        %2195 = vmatpush.bf16.msra.mxu0 0
        %2196 = vmatpush.bf16.msra.mxu0 0
        %2197 = vmatpush.bf16.msra.mxu0 0
        %2198 = vmatpush.bf16.msra.mxu0 0
        %2199 = vmatpush.bf16.msra.mxu0 0
        %2200 = vmatpush.bf16.msra.mxu0 %v2159
        %2201 = vmatpush.bf16.msra.mxu0 %v2157
        %2202 = vmatmul.bf16.gmra.mxu0 %v2178
        %v2203 = vpop.f32.mrf.mxu0
        %v2204 = vadd.f32 %v2165, %v2203
        %v2205 = vpop.f32.mrf.mxu0
        %v2206 = vadd.f32 %v2170, %v2205
        %2207 = vdwg.mxu0
        %vm2208 = vcmp.gt.f32.partialorder %v2190, 0.0
        %vm2209 = vcmp.gt.f32.partialorder %v2204, 0.0
        %vm2210 = vcmp.gt.f32.partialorder %v2192, 0.0
        %vm2211 = vcmp.gt.f32.partialorder %v2206, 0.0
        %v2212 = vmul.f32 %v2190, 0.01
        %v2213 = vmul.f32 %v2204, 0.01
        %v2214 = vmul.f32 %v2192, 0.01
        %v2215 = vmul.f32 %v2206, 0.01
        %v2216 = vsel %vm2208, %v2190, %v2212
        %v2217 = vsel %vm2209, %v2204, %v2213
        %v2218 = vsel %vm2210, %v2192, %v2214
        %v2219 = vsel %vm2211, %v2206, %v2215
        %s2220 = scalar_lea.vmem %s364, 96 [#allocation2]
        %2221 = vst [vmem:[%s2220] sm:$0xff] %v2216
        %2222 = vst [vmem:[%s2220 + $0x8] sm:$0xff] %v2217
        %2223 = vst [vmem:[%s2220 + $0x10] sm:$0xff] %v2218
        %2224 = vst [vmem:[%s2220 + $0x18] sm:$0xff] %v2219
        %s2225 = sand.u32 %s235, 1
        %s2226 = scalar_lea.sflag [#allocation3], %s2225
        %s2227 = sand.u32 %s235, 1
        %s2228 = smul.addr %s2227, 128
        %s2229 = scalar_lea.vmem [#allocation2], %s2228
        // Predicated region
        $region57: #{tpu_custom_call.1} parent=55 // pred_check
          %p2230 = pneg %p245
        $region58: #{tpu_custom_call.1} parent=55 // pred_check_branch
          %2232 = sbr.rel (%p2230) target = $region60
        $region59: #{tpu_custom_call.1} parent=55 // pred_region
          %s2233 = smul.u32 4, %s23
          %2235 = vsyncadd %s2226, 0
          %s2236 = smul.addr %s2233, 4
          %s2237 = smul.addr %s2236, 8
          %s2238 = scalar_lea.hbm %s9, %s2237
          %s2239 = sshll.u32 %s2229, 4
          %s2240 = int_to_ptr.vmem [resolvable:$true] %s2239
          %s2241 = sshll.u32 %s2238, 4
          %s2242 = int_to_ptr.hbm [resolvable:$true] %s2241
          %2247 = dma.vmem_to_hbm [thread:$0]  %s2240, 2048, %s2242, %s2226, 256, 256, 16
        $region60: #{tpu_custom_call.1} parent=55 // pred_fallthru
          _
      $region56: #{tpu_custom_call.1} parent=5 // pred_fallthru
        _
      %p2248 = scmp.le.s32.totalorder 2, %s18
      // Predicated region
      $region61: #{tpu_custom_call.1} parent=5 // pred_check
        %p2249 = pneg %p2248
      $region62: #{tpu_custom_call.1} parent=5 // pred_check_branch
        %2251 = sbr.rel (%p2249) target = $region64
      $region63: #{tpu_custom_call.1} parent=5 // pred_region
        %s2252 = ssub.s32 %s18, 2
        // Predicated region
        $region65: #{tpu_custom_call.1} parent=63 // pred_check
          %p2253 = pneg %p251
        $region66: #{tpu_custom_call.1} parent=63 // pred_check_branch
          %2255 = sbr.rel (%p2253) target = $region68
        $region67: #{tpu_custom_call.1} parent=63 // pred_region
          %s2256 = sand.u32 %s236, 1
          %s2257 = scalar_lea.sflag [#allocation3], %s2256
          %s2258 = sand.u32 %s236, 1
          %s2259 = smul.addr %s2258, 128
          %s2260 = scalar_lea.vmem [#allocation2], %s2259
          %2262 = dma.done %s2257, 2048
        $region68: #{tpu_custom_call.1} parent=63 // pred_fallthru
          _
      $region64: #{tpu_custom_call.1} parent=5 // pred_fallthru
        _
    $region6: #{tpu_custom_call.1} parent=1 // loop_footer
      %s22 = sadd.s32 1, %s18
    $region7: #{tpu_custom_call.1} parent=1 // loop_footer_branch
      %17 = sbr.rel target = $region3
    $region8: #{tpu_custom_call.1} parent=1 // loop_exit
      _
    %2263 = vsyncpa [#allocation3], 1
    %s2264 = scalar_lea.sflag [#allocation3], 1
    %2265 = vsyncpa %s2264, 1

</llo_original>
